<compile_context>
chip_gen: v7x
topology: tpu7x:2x2x1
jax: 0.10.0
libtpu: 0.0.40
codegen_flags: <defaults>
</compile_context>

<pallas_src>
import jax
import jax.numpy as jnp
import numpy as np
from jax.experimental import pallas as pl
from jax.experimental.pallas import tpu as pltpu

# ----------------------- problem sizes (small, consistent with module) ---------
B = 2           # batch
L = 8           # sequence length
HID = 32        # hid_dim
NH = 4          # n_heads
HD = HID // NH  # head_dim
PF = 64         # pf_dim
EPS = 1e-5      # nn.LayerNorm default eps
NEG = -10000000000.0
BL = B * L


def _layer_norm(x, gamma, beta):
    mu = jnp.mean(x, axis=-1, keepdims=True)
    var = jnp.mean((x - mu) ** 2, axis=-1, keepdims=True)
    return (x - mu) * jax.lax.rsqrt(var + EPS) * gamma + beta


def encoder_layer_kernel(x_ref, mask_ref, wqkv_ref, wt_ref, wof1_ref, wf2_ref,
                         vsel_ref, psel_ref, bmisc_ref, vhid_ref, o_ref):
    f32 = jnp.float32
    x = x_ref[...]                                # (B*L, HID)
    mask = mask_ref[...]                          # (B, L)

    # ---- unpack packed small params (static slices) ----
    b_qkv = bmisc_ref[0:1, :]                     # (1, 3*HID)
    b_t = bmisc_ref[1:2, 0:2 * HID]               # (1, 2*HID)  [b1 tiled | b2 tiled]
    f1b = bmisc_ref[2:3, 0:PF]                    # (1, PF)

    bo = vhid_ref[0:1, :]                         # (1, HID)
    ln1g = vhid_ref[1:2, :]
    ln1b = vhid_ref[2:3, :]
    f2b = vhid_ref[3:4, :]
    ln2g = vhid_ref[4:5, :]
    ln2b = vhid_ref[5:6, :]
    vb = vhid_ref[6, 0]                           # scalar bias of v-projection

    # ---- fused Q/K/V projection: one MXU matmul (B*L, HID) @ (HID, 3*HID) ----
    qkv = jnp.dot(x, wqkv_ref[...], preferred_element_type=f32) + b_qkv
    v = qkv[:, 2 * HID:3 * HID]                   # (B*L, HID), head-blocked channels

    # ---- per-head W1(Q), W2(K) as one block-diagonal matmul (exact equivalent) ----
    tqk = jnp.dot(qkv[:, 0:2 * HID], wt_ref[...], preferred_element_type=f32) + b_t
    tq = tqk[:, 0:HID].reshape(B, L, HID)         # (B, Lq, HID)
    tk = tqk[:, HID:2 * HID].reshape(B, L, HID)   # (B, Lk, HID)

    # ---- additive-attention energy: one big tanh + one (., HID)@(HID, NH) matmul ----
    t = jnp.tanh(tq[:, :, None, :] + tk[:, None, :, :])          # (B, Lq, Lk, HID)
    energy = jnp.dot(t.reshape(BL * L, HID), vsel_ref[...],
                     preferred_element_type=f32) + vb            # (B*Lq*Lk, NH)
    energy = energy.reshape(B, L, L, NH)                         # (B, Lq, Lk, NH)

    # mask == 0 -> NEG (broadcast over query positions & heads); softmax over keys.
    energy = jnp.where(mask[:, None, :, None] == 0.0, NEG, energy)
    m = jnp.max(energy, axis=2, keepdims=True)
    p = jnp.exp(energy - m)
    attn = p * pl.reciprocal(jnp.sum(p, axis=2, keepdims=True), approx=False)

    # ---- attention @ V in the head-blocked channel layout (no transposes) ----
    # replicate each head's weight across its HD channels, multiply by V, reduce keys.
    attn_c = jnp.dot(attn.reshape(BL * L, NH), psel_ref[...],
                     preferred_element_type=f32).reshape(B, L, L, HID)
    ctx = jnp.sum(attn_c * v.reshape(B, L, HID)[:, None, :, :], axis=2)  # (B, Lq, HID)
    ctx = ctx.reshape(BL, HID)

    # ---- output projection, residual + LayerNorm 1 ----
    wo = wof1_ref[:, 0:HID]
    wf1 = wof1_ref[:, HID:HID + PF]
    attn_out = jnp.dot(ctx, wo, preferred_element_type=f32) + bo
    src1 = _layer_norm(x + attn_out, ln1g, ln1b)

    # ---- position-wise feedforward, residual + LayerNorm 2 ----
    hdn = jnp.maximum(jnp.dot(src1, wf1, preferred_element_type=f32) + f1b, 0.0)
    ffn = jnp.dot(hdn, wf2_ref[...], preferred_element_type=f32) + f2b
    o_ref[...] = _layer_norm(src1 + ffn, ln2g, ln2b)


def encoder_layer(src, src_mask, params):
    (wq, bq, wk, bk, wv, bv, w1, b1, w2, b2, vw, vb, wo, bo,
     ln1g, ln1b, f1w, f1b, f2w, f2b, ln2g, ln2b) = params

    f32 = jnp.float32
    eye = jnp.eye(NH, dtype=f32)

    # ---- weight-only packing / fusion (would be done once at load time) ----
    w_qkv = jnp.concatenate([wq, wk, wv], axis=1)                 # (HID, 3*HID)
    w1_blk = jnp.kron(eye, w1)                                    # (HID, HID)
    w2_blk = jnp.kron(eye, w2)                                    # (HID, HID)
    zer = jnp.zeros((HID, HID), f32)
    w_t = jnp.concatenate(
        [jnp.concatenate([w1_blk, zer], axis=1),
         jnp.concatenate([zer, w2_blk], axis=1)], axis=0)         # (2*HID, 2*HID)
    w_of1 = jnp.concatenate([wo, f1w], axis=1)                    # (HID, HID + PF)
    v_sel = jnp.kron(eye, vw.reshape(HD, 1))                      # (HID, NH)  carries vw
    p_sel = jnp.kron(eye, jnp.ones((1, HD), f32))                 # (NH, HID)  head replicate

    b_misc = jnp.zeros((3, 3 * HID), f32)
    b_misc = b_misc.at[0, :].set(jnp.concatenate([bq, bk, bv], axis=1)[0])
    b_misc = b_misc.at[1, 0:2 * HID].set(
        jnp.concatenate([jnp.tile(b1, (1, NH)), jnp.tile(b2, (1, NH))], axis=1)[0])
    b_misc = b_misc.at[2, 0:PF].set(f1b[0])

    vec_hid = jnp.zeros((8, HID), f32)
    vec_hid = vec_hid.at[0].set(bo[0]).at[1].set(ln1g[0]).at[2].set(ln1b[0])
    vec_hid = vec_hid.at[3].set(f2b[0]).at[4].set(ln2g[0]).at[5].set(ln2b[0])
    vec_hid = vec_hid.at[6, 0].set(vb[0, 0])

    x2d = src.reshape(BL, HID)
    mask2d = src_mask.reshape(B, L)

    vmem = pl.BlockSpec(memory_space=pltpu.MemorySpace.VMEM)
    out2d = pl.pallas_call(
        encoder_layer_kernel,
        out_shape=jax.ShapeDtypeStruct((BL, HID), f32),
        in_specs=[vmem] * 10,
        out_specs=vmem,
    )(x2d, mask2d, w_qkv, w_t, w_of1, f2w, v_sel, p_sel, b_misc, vec_hid)
    return out2d.reshape(B, L, HID)


# ----------------------------- pure-JAX reference ------------------------------
def reference_forward(src, src_mask, params):
    (wq, bq, wk, bk, wv, bv, w1, b1, w2, b2, vw, vb, wo, bo,
     ln1g, ln1b, f1w, f1b, f2w, f2b, ln2g, ln2b) = params

    q = src @ wq + bq
    k = src @ wk + bk
    v = src @ wv + bv
    q4 = q.reshape(B, L, NH, HD).transpose(0, 2, 1, 3)   # (B,NH,L,HD)
    k4 = k.reshape(B, L, NH, HD).transpose(0, 2, 1, 3)
    v4 = v.reshape(B, L, NH, HD).transpose(0, 2, 1, 3)

    tq = q4[:, :, :, None, :] @ w1 + b1                  # (B,NH,L,1,HD)
    tk = k4[:, :, None, :, :] @ w2 + b2                  # (B,NH,1,L,HD)
    energy = jnp.tanh(tq + tk)                           # (B,NH,L,L,HD)
    energy = (energy @ vw.reshape(HD, 1))[..., 0] + vb[0, 0]   # (B,NH,L,L)

    mask4 = src_mask[:, :, None, :]                      # (B,1,1,L)
    energy = jnp.where(mask4 == 0.0, NEG, energy)
    attn = jax.nn.softmax(energy, axis=-1)

    x = attn @ v4                                        # (B,NH,L,HD)
    x = x.transpose(0, 2, 1, 3).reshape(B, L, HID)
    x = x @ wo + bo

    src1 = _layer_norm(src + x, ln1g, ln1b)
    ffn = jnp.maximum(src1 @ f1w + f1b, 0.0) @ f2w + f2b
    return _layer_norm(src1 + ffn, ln2g, ln2b)


# ----------------------------------- main ---------------------------------------
if __name__ == "__main__":
    key = jax.random.PRNGKey(0)
    keys = jax.random.split(key, 24)

    def randn(k, shape, scale=0.1):
        return jax.random.normal(k, shape, dtype=jnp.float32) * scale

    # Linear weights stored as (in, out); biases as (1, out).
    params = (
        randn(keys[0], (HID, HID)), randn(keys[1], (1, HID)),      # fc_q
        randn(keys[2], (HID, HID)), randn(keys[3], (1, HID)),      # fc_k
        randn(keys[4], (HID, HID)), randn(keys[5], (1, HID)),      # fc_v
        randn(keys[6], (HD, HD)),   randn(keys[7], (1, HD)),       # W1
        randn(keys[8], (HD, HD)),   randn(keys[9], (1, HD)),       # W2
        randn(keys[10], (1, HD)),   randn(keys[11], (1, 1)),       # v (weight, bias)
        randn(keys[12], (HID, HID)), randn(keys[13], (1, HID)),    # fc_o
        jnp.ones((1, HID), jnp.float32), jnp.zeros((1, HID), jnp.float32),  # LN1
        randn(keys[14], (HID, PF)), randn(keys[15], (1, PF)),      # ff fc1
        randn(keys[16], (PF, HID)), randn(keys[17], (1, HID)),     # ff fc2
        jnp.ones((1, HID), jnp.float32), jnp.zeros((1, HID), jnp.float32),  # LN2
    )

    src = jax.random.normal(keys[18], (B, L, HID), dtype=jnp.float32)
    # mask: [B, 1, L]; batch 1 masks out the last two key positions.
    src_mask = jnp.ones((B, 1, L), dtype=jnp.float32)
    src_mask = src_mask.at[1, 0, L - 2:].set(0.0)

    out = encoder_layer(src, src_mask, params)
    out = jax.block_until_ready(out)

    ref = reference_forward(src, src_mask, params)
    np.testing.assert_allclose(np.asarray(out), np.asarray(ref), atol=1e-4, rtol=1e-4)

    print("KERNEL_OK")
</pallas_src>

<mosaic_0001>
module attributes {stable_mosaic.version = 11 : i64} {
  func.func @encoder_layer_kernel(%arg0: memref<16x32xf32, #tpu.memory_space<vmem>>, %arg1: memref<2x8xf32, #tpu.memory_space<vmem>>, %arg2: memref<32x96xf32, #tpu.memory_space<vmem>>, %arg3: memref<64x64xf32, #tpu.memory_space<vmem>>, %arg4: memref<32x96xf32, #tpu.memory_space<vmem>>, %arg5: memref<64x32xf32, #tpu.memory_space<vmem>>, %arg6: memref<32x4xf32, #tpu.memory_space<vmem>>, %arg7: memref<4x32xf32, #tpu.memory_space<vmem>>, %arg8: memref<3x96xf32, #tpu.memory_space<vmem>>, %arg9: memref<8x32xf32, #tpu.memory_space<vmem>>, %arg10: memref<16x32xf32, #tpu.memory_space<vmem>>) attributes {dimension_semantics = [], scalar_prefetch = 0 : i64, scratch_operands = 0 : i64, tpu.core_type = #tpu.core_type<tc>} {
    %c0 = arith.constant 0 : index
    %c0_0 = arith.constant 0 : index
    %0 = vector.load %arg0[%c0, %c0_0] : memref<16x32xf32, #tpu.memory_space<vmem>>, vector<16x32xf32>
    %c0_1 = arith.constant 0 : index
    %c0_2 = arith.constant 0 : index
    %1 = vector.load %arg1[%c0_1, %c0_2] : memref<2x8xf32, #tpu.memory_space<vmem>>, vector<2x8xf32>
    %c0_3 = arith.constant 0 : index
    %c0_4 = arith.constant 0 : index
    %2 = vector.load %arg8[%c0_3, %c0_4] : memref<3x96xf32, #tpu.memory_space<vmem>>, vector<1x96xf32>
    %c1 = arith.constant 1 : index
    %c0_5 = arith.constant 0 : index
    %3 = vector.load %arg8[%c1, %c0_5] : memref<3x96xf32, #tpu.memory_space<vmem>>, vector<1x64xf32>
    %c2 = arith.constant 2 : index
    %c0_6 = arith.constant 0 : index
    %4 = vector.load %arg8[%c2, %c0_6] : memref<3x96xf32, #tpu.memory_space<vmem>>, vector<1x64xf32>
    %c0_7 = arith.constant 0 : index
    %c0_8 = arith.constant 0 : index
    %5 = vector.load %arg9[%c0_7, %c0_8] : memref<8x32xf32, #tpu.memory_space<vmem>>, vector<1x32xf32>
    %c1_9 = arith.constant 1 : index
    %c0_10 = arith.constant 0 : index
    %6 = vector.load %arg9[%c1_9, %c0_10] : memref<8x32xf32, #tpu.memory_space<vmem>>, vector<1x32xf32>
    %c2_11 = arith.constant 2 : index
    %c0_12 = arith.constant 0 : index
    %7 = vector.load %arg9[%c2_11, %c0_12] : memref<8x32xf32, #tpu.memory_space<vmem>>, vector<1x32xf32>
    %c3 = arith.constant 3 : index
    %c0_13 = arith.constant 0 : index
    %8 = vector.load %arg9[%c3, %c0_13] : memref<8x32xf32, #tpu.memory_space<vmem>>, vector<1x32xf32>
    %c4 = arith.constant 4 : index
    %c0_14 = arith.constant 0 : index
    %9 = vector.load %arg9[%c4, %c0_14] : memref<8x32xf32, #tpu.memory_space<vmem>>, vector<1x32xf32>
    %c5 = arith.constant 5 : index
    %c0_15 = arith.constant 0 : index
    %10 = vector.load %arg9[%c5, %c0_15] : memref<8x32xf32, #tpu.memory_space<vmem>>, vector<1x32xf32>
    %c6 = arith.constant 6 : index
    %c0_16 = arith.constant 0 : index
    %11 = vector.load %arg9[%c6, %c0_16] : memref<8x32xf32, #tpu.memory_space<vmem>>, vector<1x1xf32>
    %12 = vector.extract %11[0, 0] : f32 from vector<1x1xf32>
    %c0_17 = arith.constant 0 : index
    %c0_18 = arith.constant 0 : index
    %13 = vector.load %arg2[%c0_17, %c0_18] : memref<32x96xf32, #tpu.memory_space<vmem>>, vector<32x96xf32>
    %cst = arith.constant dense<0.000000e+00> : vector<16x96xf32>
    %14 = tpu.matmul %0, %13, %cst {dimension_numbers = #tpu.dot_dimension_numbers<[1], [0], [0], [1], [0, 0, 1, 1], [], []>} : vector<16x32xf32>, vector<32x96xf32>, vector<16x96xf32> -> vector<16x96xf32>
    %15 = vector.broadcast %2 : vector<1x96xf32> to vector<16x96xf32>
    %16 = arith.addf %14, %15 : vector<16x96xf32>
    %17 = vector.extract_strided_slice %16 {offsets = [0, 64], sizes = [16, 32], strides = [1, 1]} : vector<16x96xf32> to vector<16x32xf32>
    %18 = vector.extract_strided_slice %16 {offsets = [0, 0], sizes = [16, 64], strides = [1, 1]} : vector<16x96xf32> to vector<16x64xf32>
    %c0_19 = arith.constant 0 : index
    %c0_20 = arith.constant 0 : index
    %19 = vector.load %arg3[%c0_19, %c0_20] : memref<64x64xf32, #tpu.memory_space<vmem>>, vector<64x64xf32>
    %cst_21 = arith.constant dense<0.000000e+00> : vector<16x64xf32>
    %20 = tpu.matmul %18, %19, %cst_21 {dimension_numbers = #tpu.dot_dimension_numbers<[1], [0], [0], [1], [0, 0, 1, 1], [], []>} : vector<16x64xf32>, vector<64x64xf32>, vector<16x64xf32> -> vector<16x64xf32>
    %21 = vector.broadcast %3 : vector<1x64xf32> to vector<16x64xf32>
    %22 = arith.addf %20, %21 : vector<16x64xf32>
    %23 = vector.extract_strided_slice %22 {offsets = [0, 0], sizes = [16, 32], strides = [1, 1]} : vector<16x64xf32> to vector<16x32xf32>
    %24 = vector.shape_cast %23 : vector<16x32xf32> to vector<2x8x32xf32>
    %25 = vector.extract_strided_slice %22 {offsets = [0, 32], sizes = [16, 32], strides = [1, 1]} : vector<16x64xf32> to vector<16x32xf32>
    %26 = vector.shape_cast %25 : vector<16x32xf32> to vector<2x8x32xf32>
    %27 = vector.shape_cast %24 : vector<2x8x32xf32> to vector<2x8x1x32xf32>
    %28 = vector.shape_cast %26 : vector<2x8x32xf32> to vector<2x1x8x32xf32>
    %29 = vector.broadcast %27 : vector<2x8x1x32xf32> to vector<2x8x8x32xf32>
    %30 = vector.broadcast %28 : vector<2x1x8x32xf32> to vector<2x8x8x32xf32>
    %31 = arith.addf %29, %30 : vector<2x8x8x32xf32>
    %32 = math.tanh %31 : vector<2x8x8x32xf32>
    %33 = vector.shape_cast %32 : vector<2x8x8x32xf32> to vector<128x32xf32>
    %c0_22 = arith.constant 0 : index
    %c0_23 = arith.constant 0 : index
    %34 = vector.load %arg6[%c0_22, %c0_23] : memref<32x4xf32, #tpu.memory_space<vmem>>, vector<32x4xf32>
    %cst_24 = arith.constant dense<0.000000e+00> : vector<128x4xf32>
    %35 = tpu.matmul %33, %34, %cst_24 {dimension_numbers = #tpu.dot_dimension_numbers<[1], [0], [0], [1], [0, 0, 1, 1], [], []>} : vector<128x32xf32>, vector<32x4xf32>, vector<128x4xf32> -> vector<128x4xf32>
    %36 = vector.broadcast %12 : f32 to vector<128x4xf32>
    %37 = arith.addf %35, %36 : vector<128x4xf32>
    %38 = vector.shape_cast %37 : vector<128x4xf32> to vector<2x8x8x4xf32>
    %39 = vector.shape_cast %1 : vector<2x8xf32> to vector<2x1x8x1xf32>
    %cst_25 = arith.constant 0.000000e+00 : f32
    %40 = vector.broadcast %cst_25 : f32 to vector<2x1x8x1xf32>
    %41 = arith.cmpf oeq, %39, %40 : vector<2x1x8x1xf32>
    %cst_26 = arith.constant -1.000000e+10 : f32
    %42 = vector.shape_cast %41 : vector<2x1x8x1xi1> to vector<2x1x8x1xi1>
    %43 = vector.broadcast %42 : vector<2x1x8x1xi1> to vector<2x8x8x4xi1>
    %44 = vector.broadcast %cst_26 : f32 to vector<2x8x8x4xf32>
    %45 = arith.select %43, %44, %38 : vector<2x8x8x4xi1>, vector<2x8x8x4xf32>
    %cst_27 = arith.constant dense<0xFF800000> : vector<2x8x4xf32>
    %46 = vector.multi_reduction <maximumf>, %45, %cst_27 [2] : vector<2x8x8x4xf32> to vector<2x8x4xf32>
    %47 = vector.shape_cast %46 : vector<2x8x4xf32> to vector<2x8x1x4xf32>
    %48 = vector.broadcast %47 : vector<2x8x1x4xf32> to vector<2x8x8x4xf32>
    %49 = arith.subf %45, %48 : vector<2x8x8x4xf32>
    %50 = math.exp %49 : vector<2x8x8x4xf32>
    %cst_28 = arith.constant dense<0.000000e+00> : vector<2x8x4xf32>
    %51 = vector.multi_reduction <add>, %50, %cst_28 [2] : vector<2x8x8x4xf32> to vector<2x8x4xf32>
    %52 = vector.shape_cast %51 : vector<2x8x4xf32> to vector<2x8x1x4xf32>
    %53 = tpu.reciprocal %52 : vector<2x8x1x4xf32> -> vector<2x8x1x4xf32>
    %54 = vector.broadcast %53 : vector<2x8x1x4xf32> to vector<2x8x8x4xf32>
    %55 = arith.mulf %50, %54 : vector<2x8x8x4xf32>
    %56 = vector.shape_cast %55 : vector<2x8x8x4xf32> to vector<128x4xf32>
    %c0_29 = arith.constant 0 : index
    %c0_30 = arith.constant 0 : index
    %57 = vector.load %arg7[%c0_29, %c0_30] : memref<4x32xf32, #tpu.memory_space<vmem>>, vector<4x32xf32>
    %cst_31 = arith.constant dense<0.000000e+00> : vector<128x32xf32>
    %58 = tpu.matmul %56, %57, %cst_31 {dimension_numbers = #tpu.dot_dimension_numbers<[1], [0], [0], [1], [0, 0, 1, 1], [], []>} : vector<128x4xf32>, vector<4x32xf32>, vector<128x32xf32> -> vector<128x32xf32>
    %59 = vector.shape_cast %58 : vector<128x32xf32> to vector<2x8x8x32xf32>
    %60 = vector.shape_cast %17 : vector<16x32xf32> to vector<2x8x32xf32>
    %61 = vector.shape_cast %60 : vector<2x8x32xf32> to vector<2x1x8x32xf32>
    %62 = vector.broadcast %61 : vector<2x1x8x32xf32> to vector<2x8x8x32xf32>
    %63 = arith.mulf %59, %62 : vector<2x8x8x32xf32>
    %cst_32 = arith.constant dense<0.000000e+00> : vector<2x8x32xf32>
    %64 = vector.multi_reduction <add>, %63, %cst_32 [2] : vector<2x8x8x32xf32> to vector<2x8x32xf32>
    %65 = vector.shape_cast %64 : vector<2x8x32xf32> to vector<16x32xf32>
    %c0_33 = arith.constant 0 : index
    %c0_34 = arith.constant 0 : index
    %66 = vector.load %arg4[%c0_33, %c0_34] : memref<32x96xf32, #tpu.memory_space<vmem>>, vector<32x32xf32>
    %c0_35 = arith.constant 0 : index
    %c32 = arith.constant 32 : index
    %67 = vector.load %arg4[%c0_35, %c32] : memref<32x96xf32, #tpu.memory_space<vmem>>, vector<32x64xf32>
    %cst_36 = arith.constant dense<0.000000e+00> : vector<16x32xf32>
    %68 = tpu.matmul %65, %66, %cst_36 {dimension_numbers = #tpu.dot_dimension_numbers<[1], [0], [0], [1], [0, 0, 1, 1], [], []>} : vector<16x32xf32>, vector<32x32xf32>, vector<16x32xf32> -> vector<16x32xf32>
    %69 = vector.broadcast %5 : vector<1x32xf32> to vector<16x32xf32>
    %70 = arith.addf %68, %69 : vector<16x32xf32>
    %71 = arith.addf %0, %70 : vector<16x32xf32>
    %cst_37 = arith.constant dense<0.000000e+00> : vector<16xf32>
    %72 = vector.multi_reduction <add>, %71, %cst_37 [1] : vector<16x32xf32> to vector<16xf32>
    %73 = vector.shape_cast %72 : vector<16xf32> to vector<16x1xf32>
    %cst_38 = arith.constant 3.200000e+01 : f32
    %74 = vector.broadcast %cst_38 : f32 to vector<16x1xf32>
    %75 = arith.divf %73, %74 : vector<16x1xf32>
    %76 = vector.broadcast %75 : vector<16x1xf32> to vector<16x32xf32>
    %77 = arith.subf %71, %76 : vector<16x32xf32>
    %78 = arith.mulf %77, %77 : vector<16x32xf32>
    %cst_39 = arith.constant dense<0.000000e+00> : vector<16xf32>
    %79 = vector.multi_reduction <add>, %78, %cst_39 [1] : vector<16x32xf32> to vector<16xf32>
    %80 = vector.shape_cast %79 : vector<16xf32> to vector<16x1xf32>
    %cst_40 = arith.constant 3.200000e+01 : f32
    %81 = vector.broadcast %cst_40 : f32 to vector<16x1xf32>
    %82 = arith.divf %80, %81 : vector<16x1xf32>
    %83 = vector.broadcast %75 : vector<16x1xf32> to vector<16x32xf32>
    %84 = arith.subf %71, %83 : vector<16x32xf32>
    %cst_41 = arith.constant 9.99999974E-6 : f32
    %85 = vector.broadcast %cst_41 : f32 to vector<16x1xf32>
    %86 = arith.addf %82, %85 : vector<16x1xf32>
    %87 = math.rsqrt %86 : vector<16x1xf32>
    %88 = vector.broadcast %87 : vector<16x1xf32> to vector<16x32xf32>
    %89 = arith.mulf %84, %88 : vector<16x32xf32>
    %90 = vector.broadcast %6 : vector<1x32xf32> to vector<16x32xf32>
    %91 = arith.mulf %89, %90 : vector<16x32xf32>
    %92 = vector.broadcast %7 : vector<1x32xf32> to vector<16x32xf32>
    %93 = arith.addf %91, %92 : vector<16x32xf32>
    %cst_42 = arith.constant dense<0.000000e+00> : vector<16x64xf32>
    %94 = tpu.matmul %93, %67, %cst_42 {dimension_numbers = #tpu.dot_dimension_numbers<[1], [0], [0], [1], [0, 0, 1, 1], [], []>} : vector<16x32xf32>, vector<32x64xf32>, vector<16x64xf32> -> vector<16x64xf32>
    %95 = vector.broadcast %4 : vector<1x64xf32> to vector<16x64xf32>
    %96 = arith.addf %94, %95 : vector<16x64xf32>
    %cst_43 = arith.constant 0.000000e+00 : f32
    %97 = vector.broadcast %cst_43 : f32 to vector<16x64xf32>
    %98 = arith.maximumf %96, %97 : vector<16x64xf32>
    %c0_44 = arith.constant 0 : index
    %c0_45 = arith.constant 0 : index
    %99 = vector.load %arg5[%c0_44, %c0_45] : memref<64x32xf32, #tpu.memory_space<vmem>>, vector<64x32xf32>
    %cst_46 = arith.constant dense<0.000000e+00> : vector<16x32xf32>
    %100 = tpu.matmul %98, %99, %cst_46 {dimension_numbers = #tpu.dot_dimension_numbers<[1], [0], [0], [1], [0, 0, 1, 1], [], []>} : vector<16x64xf32>, vector<64x32xf32>, vector<16x32xf32> -> vector<16x32xf32>
    %101 = vector.broadcast %8 : vector<1x32xf32> to vector<16x32xf32>
    %102 = arith.addf %100, %101 : vector<16x32xf32>
    %103 = arith.addf %93, %102 : vector<16x32xf32>
    %cst_47 = arith.constant dense<0.000000e+00> : vector<16xf32>
    %104 = vector.multi_reduction <add>, %103, %cst_47 [1] : vector<16x32xf32> to vector<16xf32>
    %105 = vector.shape_cast %104 : vector<16xf32> to vector<16x1xf32>
    %cst_48 = arith.constant 3.200000e+01 : f32
    %106 = vector.broadcast %cst_48 : f32 to vector<16x1xf32>
    %107 = arith.divf %105, %106 : vector<16x1xf32>
    %108 = vector.broadcast %107 : vector<16x1xf32> to vector<16x32xf32>
    %109 = arith.subf %103, %108 : vector<16x32xf32>
    %110 = arith.mulf %109, %109 : vector<16x32xf32>
    %cst_49 = arith.constant dense<0.000000e+00> : vector<16xf32>
    %111 = vector.multi_reduction <add>, %110, %cst_49 [1] : vector<16x32xf32> to vector<16xf32>
    %112 = vector.shape_cast %111 : vector<16xf32> to vector<16x1xf32>
    %cst_50 = arith.constant 3.200000e+01 : f32
    %113 = vector.broadcast %cst_50 : f32 to vector<16x1xf32>
    %114 = arith.divf %112, %113 : vector<16x1xf32>
    %115 = vector.broadcast %107 : vector<16x1xf32> to vector<16x32xf32>
    %116 = arith.subf %103, %115 : vector<16x32xf32>
    %cst_51 = arith.constant 9.99999974E-6 : f32
    %117 = vector.broadcast %cst_51 : f32 to vector<16x1xf32>
    %118 = arith.addf %114, %117 : vector<16x1xf32>
    %119 = math.rsqrt %118 : vector<16x1xf32>
    %120 = vector.broadcast %119 : vector<16x1xf32> to vector<16x32xf32>
    %121 = arith.mulf %116, %120 : vector<16x32xf32>
    %122 = vector.broadcast %9 : vector<1x32xf32> to vector<16x32xf32>
    %123 = arith.mulf %121, %122 : vector<16x32xf32>
    %124 = vector.broadcast %10 : vector<1x32xf32> to vector<16x32xf32>
    %125 = arith.addf %123, %124 : vector<16x32xf32>
    %c0_52 = arith.constant 0 : index
    %c0_53 = arith.constant 0 : index
    %126 = vector.load %arg10[%c0_52, %c0_53] : memref<16x32xf32, #tpu.memory_space<vmem>>, vector<16x32xf32>
    tpu.vector_store %arg10[%c0_52, %c0_53], %125 {strides = array<i32>} : memref<16x32xf32, #tpu.memory_space<vmem>>, vector<16x32xf32>,
    return
  }
}

</mosaic_0001>

<llo_original>
// kernel: tpu_custom_call.1
$region0: #{tpu_custom_call.1}
  #allocation0 [shape = 'u32[]', space=smem, size = 0x4, offset = 0x4, fixed_abs, tag = 'smem constant byte address 0x4 - core index']
  #allocation1 [shape = 'u32[144,128]{1,0:T(1,128)}', space=vmem, size = 0x12000, scoped, tag = 'internal scratch']
  %s0 = inlined_call_operand.vmem [shape: f32[16,32], index: 0, kind: input, shape index: {}]
  %s1 = inlined_call_operand.vmem [shape: f32[2,8], index: 1, kind: input, shape index: {}]
  %s2 = inlined_call_operand.vmem [shape: f32[32,96], index: 2, kind: input, shape index: {}]
  %s3 = inlined_call_operand.vmem [shape: f32[64,64], index: 3, kind: input, shape index: {}]
  %s4 = inlined_call_operand.hbm [shape: f32[32,96], index: 4, kind: input, shape index: {}]
  %s5 = inlined_call_operand.vmem [shape: f32[64,32], index: 5, kind: input, shape index: {}]
  %s6 = inlined_call_operand.vmem [shape: f32[32,4], index: 6, kind: input, shape index: {}]
  %s7 = inlined_call_operand.vmem [shape: f32[4,32], index: 7, kind: input, shape index: {}]
  %s8 = inlined_call_operand.vmem [shape: f32[3,96], index: 8, kind: input, shape index: {}]
  %s9 = inlined_call_operand.vmem [shape: f32[8,32], index: 9, kind: input, shape index: {}]
  %s10 = inlined_call_operand.hbm [shape: f32[16,32], index: 10, kind: output, shape index: {}]
  %s11 = sld [smem:[#allocation0]]
  $region54: #{tpu_custom_call.1} parent=0
    _
  %s13 = ssub.s32 1, %s11
  %s14 = scalar_select 0, %s13, %s11
  $region1: #{tpu_custom_call.1} parent=0
    #allocation2 [shape = 'u8[16384]{0}', space=vmem, size = 0x4000, scoped, tag = 'input window, operand 4, single buffered']
    #allocation3 [shape = 's32[1]{0}', space=sflag, size = 0x4, scoped, tag = 'scoped memory for tpu_custom_call.1']
    #allocation4 [shape = 's32[1]{0}', space=sflag, size = 0x4, scoped, tag = 'scoped memory for tpu_custom_call.1']
    #allocation5 [shape = 'u8[8192]{0}', space=vmem, size = 0x2000, scoped, tag = 'output window, operand 0, single buffered']
    %15 = vsyncpa [#allocation3], 0
    %16 = vsyncpa [#allocation4], 0
    // Predicated region
    $region2: #{tpu_custom_call.1} parent=1 // pred_check
      _
    $region3: #{tpu_custom_call.1} parent=1 // pred_check_branch
      %18 = sbr.rel (0) target = $region5
    $region4: #{tpu_custom_call.1} parent=1 // pred_region
      _
    $region5: #{tpu_custom_call.1} parent=1 // pred_fallthru
      _
    // Predicated region
    $region6: #{tpu_custom_call.1} parent=1 // pred_check
      _
    $region7: #{tpu_custom_call.1} parent=1 // pred_check_branch
      %20 = sbr.rel (0) target = $region9
    $region8: #{tpu_custom_call.1} parent=1 // pred_region
      _
    $region9: #{tpu_custom_call.1} parent=1 // pred_fallthru
      _
    // Predicated region
    $region10: #{tpu_custom_call.1} parent=1 // pred_check
      _
    $region11: #{tpu_custom_call.1} parent=1 // pred_check_branch
      %22 = sbr.rel (0) target = $region13
    $region12: #{tpu_custom_call.1} parent=1 // pred_region
      _
    $region13: #{tpu_custom_call.1} parent=1 // pred_fallthru
      _
    // Predicated region
    $region14: #{tpu_custom_call.1} parent=1 // pred_check
      _
    $region15: #{tpu_custom_call.1} parent=1 // pred_check_branch
      %24 = sbr.rel (0) target = $region17
    $region16: #{tpu_custom_call.1} parent=1 // pred_region
      _
    $region17: #{tpu_custom_call.1} parent=1 // pred_fallthru
      _
    // Predicated region
    $region18: #{tpu_custom_call.1} parent=1 // pred_check
      _
    $region19: #{tpu_custom_call.1} parent=1 // pred_check_branch
      %26 = sbr.rel (0) target = $region21
    $region20: #{tpu_custom_call.1} parent=1 // pred_region
      %s28 = ssub.s32 512, 512
      %29 = vsyncadd [#allocation3], %s28
      %s30 = sshll.u32 [#allocation2], 4
      %s31 = int_to_ptr.vmem [resolvable:$true] %s30
      %36 = dma.hbm_to_vmem [thread:$0]  %s4, 512, %s31, [#allocation3], 128, 128, 8
    $region21: #{tpu_custom_call.1} parent=1 // pred_fallthru
      _
    // Predicated region
    $region22: #{tpu_custom_call.1} parent=1 // pred_check
      _
    $region23: #{tpu_custom_call.1} parent=1 // pred_check_branch
      %38 = sbr.rel (0) target = $region25
    $region24: #{tpu_custom_call.1} parent=1 // pred_region
      _
    $region25: #{tpu_custom_call.1} parent=1 // pred_fallthru
      _
    // Predicated region
    $region26: #{tpu_custom_call.1} parent=1 // pred_check
      _
    $region27: #{tpu_custom_call.1} parent=1 // pred_check_branch
      %40 = sbr.rel (0) target = $region29
    $region28: #{tpu_custom_call.1} parent=1 // pred_region
      _
    $region29: #{tpu_custom_call.1} parent=1 // pred_fallthru
      _
    // Predicated region
    $region30: #{tpu_custom_call.1} parent=1 // pred_check
      _
    $region31: #{tpu_custom_call.1} parent=1 // pred_check_branch
      %42 = sbr.rel (0) target = $region33
    $region32: #{tpu_custom_call.1} parent=1 // pred_region
      _
    $region33: #{tpu_custom_call.1} parent=1 // pred_fallthru
      _
    // Predicated region
    $region34: #{tpu_custom_call.1} parent=1 // pred_check
      _
    $region35: #{tpu_custom_call.1} parent=1 // pred_check_branch
      %44 = sbr.rel (0) target = $region37
    $region36: #{tpu_custom_call.1} parent=1 // pred_region
      _
    $region37: #{tpu_custom_call.1} parent=1 // pred_fallthru
      _
    // Predicated region
    $region38: #{tpu_custom_call.1} parent=1 // pred_check
      _
    $region39: #{tpu_custom_call.1} parent=1 // pred_check_branch
      %46 = sbr.rel (0) target = $region41
    $region40: #{tpu_custom_call.1} parent=1 // pred_region
      _
    $region41: #{tpu_custom_call.1} parent=1 // pred_fallthru
      _
    // Predicated region
    $region42: #{tpu_custom_call.1} parent=1 // pred_check
      _
    $region43: #{tpu_custom_call.1} parent=1 // pred_check_branch
      %48 = sbr.rel (0) target = $region45
    $region44: #{tpu_custom_call.1} parent=1 // pred_region
      %49 = dma.done [#allocation3], 512
    $region45: #{tpu_custom_call.1} parent=1 // pred_fallthru
      _
    %v50 = vld [vmem:[%s0] sm:$0xff]
    %v51 = vld [vmem:[%s0 + $0x8] sm:$0xff]
    %v52 = vld [vmem:[%s1] sm:$0x3]
    %v53 = vld [vmem:[%s8] sm:$0x1]
    %v54 = vld [vmem:[%s8 + $0x1] sm:$0x1]
    %v55 = vld [vmem:[%s8 + $0x2] sm:$0x1]
    %v56 = vld [vmem:[%s9] sm:$0x1]
    %v57 = vld [vmem:[%s9 + $0x1] sm:$0x1]
    %v58 = vld [vmem:[%s9 + $0x2] sm:$0x1]
    %v59 = vld [vmem:[%s9 + $0x3] sm:$0x1]
    %v60 = vld [vmem:[%s9 + $0x4] sm:$0x1]
    %v61 = vld [vmem:[%s9 + $0x5] sm:$0x1]
    %v62 = vld [vmem:[%s9 + $0x6] sm:$0x1]
    %s63 = vtos %v62
    %v64 = vld [vmem:[%s2] sm:$0xff]
    %v65 = vld [vmem:[%s2 + $0x8] sm:$0xff]
    %v66 = vld [vmem:[%s2 + $0x10] sm:$0xff]
    %v67 = vld [vmem:[%s2 + $0x18] sm:$0xff]
    %v68 = vlaneseq
    %v69 = vshrl.u32 %v68, 7
    %v70 = vsub.s32 0, %v69
    %v71 = vrot.slane %v53, %v70
    %vm72 = vcmask 261120
    %v74 = vsel %vm72, %v50, 0
    %v77 = vsel %vm72, %v51, 0
    %79 = vmatprep.subr.mxu0 0.0
    %80 = vmatpush1.msra.mxu0 %v64
    %81 = vmatprep.subr.mxu0 0.0
    %82 = vmatpush1.msra.mxu0 %v65
    %83 = vmatprep.subr.mxu0 0.0
    %84 = vmatpush1.msra.mxu0 %v66
    %85 = vmatprep.subr.mxu0 0.0
    %86 = vmatpush1.msra.mxu0 %v67
    %87 = vmatprep.subr.mxu0 0.0
    %88 = vmatpush1.msra.mxu0 0.0
    %89 = vmatprep.subr.mxu0 0.0
    %90 = vmatpush1.msra.mxu0 0.0
    %91 = vmatprep.subr.mxu0 0.0
    %92 = vmatpush1.msra.mxu0 0.0
    %93 = vmatprep.subr.mxu0 0.0
    %94 = vmatpush1.msra.mxu0 0.0
    %95 = vmatprep.subr.mxu0 0.0
    %96 = vmatpush1.msra.mxu0 0.0
    %97 = vmatprep.subr.mxu0 0.0
    %98 = vmatpush1.msra.mxu0 0.0
    %99 = vmatprep.subr.mxu0 0.0
    %100 = vmatpush1.msra.mxu0 0.0
    %101 = vmatprep.subr.mxu0 0.0
    %102 = vmatpush1.msra.mxu0 0.0
    %103 = vmatprep.subr.mxu0 0.0
    %104 = vmatpush1.msra.mxu0 0.0
    %105 = vmatprep.subr.mxu0 0.0
    %106 = vmatpush1.msra.mxu0 0.0
    %107 = vmatprep.subr.mxu0 0.0
    %108 = vmatpush1.msra.mxu0 0.0
    %109 = vmatprep.subr.mxu0 0.0
    %110 = vmatpush1.msra.mxu0 0.0
    %111 = vmatprep.subr.mxu0 0.0
    %112 = vmatpush1.msra.mxu0 0.0
    %113 = vmatprep.subr.mxu0 0.0
    %114 = vmatpush1.msra.mxu0 0.0
    %115 = vmatprep.subr.mxu0 0.0
    %116 = vmatpush1.msra.mxu0 0.0
    %117 = vmatprep.subr.mxu0 0.0
    %118 = vmatpush1.msra.mxu0 0.0
    %119 = vmatprep.subr.mxu0 0.0
    %120 = vmatpush1.msra.mxu0 0.0
    %121 = vmatprep.subr.mxu0 0.0
    %122 = vmatpush1.msra.mxu0 0.0
    %123 = vmatprep.subr.mxu0 0.0
    %124 = vmatpush1.msra.mxu0 0.0
    %125 = vmatprep.subr.mxu0 0.0
    %126 = vmatpush1.msra.mxu0 0.0
    %127 = vmatprep.subr.mxu0 0.0
    %128 = vmatpush1.msra.mxu0 0.0
    %129 = vmatprep.subr.mxu0 0.0
    %130 = vmatpush1.msra.mxu0 0.0
    %131 = vmatprep.subr.mxu0 0.0
    %132 = vmatpush1.msra.mxu0 0.0
    %133 = vmatprep.subr.mxu0 0.0
    %134 = vmatpush1.msra.mxu0 0.0
    %135 = vmatprep.subr.mxu0 0.0
    %136 = vmatpush1.msra.mxu0 0.0
    %137 = vmatprep.subr.mxu0 0.0
    %138 = vmatpush1.msra.mxu0 0.0
    %139 = vmatprep.subr.mxu0 0.0
    %140 = vmatpush1.msra.mxu0 0.0
    %141 = vmatprep.subr.mxu0 0.0
    %142 = vmatpush1.msra.mxu0 0.0
    %143 = vmatprep.mubr.f32.mxu0 0.0
    %144 = vmatmul.mubr.f32.gmra.mrb[0].mxu0 %v74
    %v145 = vpop.f32.mrb[0].mxu0
    %v146 = vadd.f32 %v71, %v145
    %v147 = vpop.f32.mrb[0].mxu0
    %148 = vmatprep.mubr.f32.mxu0 0.0
    %149 = vmatmul.mubr.f32.gmra.mrb[0].mxu0 %v77
    %v150 = vpop.f32.mrb[0].mxu0
    %v151 = vadd.f32 %v71, %v150
    %v152 = vpop.f32.mrb[0].mxu0
    %153 = vdwg.mxu0
    %v154 = vld [vmem:[%s3] sm:$0xff]
    %v155 = vld [vmem:[%s3 + $0x8] sm:$0xff]
    %v156 = vld [vmem:[%s3 + $0x10] sm:$0xff]
    %v157 = vld [vmem:[%s3 + $0x18] sm:$0xff]
    %v158 = vld [vmem:[%s3 + $0x20] sm:$0xff]
    %v159 = vld [vmem:[%s3 + $0x28] sm:$0xff]
    %v160 = vld [vmem:[%s3 + $0x30] sm:$0xff]
    %v161 = vld [vmem:[%s3 + $0x38] sm:$0xff]
    %v162 = vlaneseq
    %v163 = vshrl.u32 %v162, 7
    %v164 = vsub.s32 0, %v163
    %v165 = vrot.slane %v54, %v164
    %vm166 = vcmask 523264
    %v168 = vsel %vm166, %v146, 0
    %v171 = vsel %vm166, %v151, 0
    %173 = vmatprep.subr.mxu0 0.0
    %174 = vmatpush1.msra.mxu0 %v154
    %175 = vmatprep.subr.mxu0 0.0
    %176 = vmatpush1.msra.mxu0 %v155
    %177 = vmatprep.subr.mxu0 0.0
    %178 = vmatpush1.msra.mxu0 %v156
    %179 = vmatprep.subr.mxu0 0.0
    %180 = vmatpush1.msra.mxu0 %v157
    %181 = vmatprep.subr.mxu0 0.0
    %182 = vmatpush1.msra.mxu0 %v158
    %183 = vmatprep.subr.mxu0 0.0
    %184 = vmatpush1.msra.mxu0 %v159
    %185 = vmatprep.subr.mxu0 0.0
    %186 = vmatpush1.msra.mxu0 %v160
    %187 = vmatprep.subr.mxu0 0.0
    %188 = vmatpush1.msra.mxu0 %v161
    %189 = vmatprep.subr.mxu0 0.0
    %190 = vmatpush1.msra.mxu0 0.0
    %191 = vmatprep.subr.mxu0 0.0
    %192 = vmatpush1.msra.mxu0 0.0
    %193 = vmatprep.subr.mxu0 0.0
    %194 = vmatpush1.msra.mxu0 0.0
    %195 = vmatprep.subr.mxu0 0.0
    %196 = vmatpush1.msra.mxu0 0.0
    %197 = vmatprep.subr.mxu0 0.0
    %198 = vmatpush1.msra.mxu0 0.0
    %199 = vmatprep.subr.mxu0 0.0
    %200 = vmatpush1.msra.mxu0 0.0
    %201 = vmatprep.subr.mxu0 0.0
    %202 = vmatpush1.msra.mxu0 0.0
    %203 = vmatprep.subr.mxu0 0.0
    %204 = vmatpush1.msra.mxu0 0.0
    %205 = vmatprep.subr.mxu0 0.0
    %206 = vmatpush1.msra.mxu0 0.0
    %207 = vmatprep.subr.mxu0 0.0
    %208 = vmatpush1.msra.mxu0 0.0
    %209 = vmatprep.subr.mxu0 0.0
    %210 = vmatpush1.msra.mxu0 0.0
    %211 = vmatprep.subr.mxu0 0.0
    %212 = vmatpush1.msra.mxu0 0.0
    %213 = vmatprep.subr.mxu0 0.0
    %214 = vmatpush1.msra.mxu0 0.0
    %215 = vmatprep.subr.mxu0 0.0
    %216 = vmatpush1.msra.mxu0 0.0
    %217 = vmatprep.subr.mxu0 0.0
    %218 = vmatpush1.msra.mxu0 0.0
    %219 = vmatprep.subr.mxu0 0.0
    %220 = vmatpush1.msra.mxu0 0.0
    %221 = vmatprep.subr.mxu0 0.0
    %222 = vmatpush1.msra.mxu0 0.0
    %223 = vmatprep.subr.mxu0 0.0
    %224 = vmatpush1.msra.mxu0 0.0
    %225 = vmatprep.subr.mxu0 0.0
    %226 = vmatpush1.msra.mxu0 0.0
    %227 = vmatprep.subr.mxu0 0.0
    %228 = vmatpush1.msra.mxu0 0.0
    %229 = vmatprep.subr.mxu0 0.0
    %230 = vmatpush1.msra.mxu0 0.0
    %231 = vmatprep.subr.mxu0 0.0
    %232 = vmatpush1.msra.mxu0 0.0
    %233 = vmatprep.subr.mxu0 0.0
    %234 = vmatpush1.msra.mxu0 0.0
    %235 = vmatprep.subr.mxu0 0.0
    %236 = vmatpush1.msra.mxu0 0.0
    %237 = vmatprep.mubr.f32.mxu0 0.0
    %238 = vmatmul.mubr.f32.gmra.mrb[0].mxu0 %v168
    %v239 = vpop.f32.mrb[0].mxu0
    %v240 = vadd.f32 %v165, %v239
    %v241 = vpop.f32.mrb[0].mxu0
    %242 = vmatprep.mubr.f32.mxu0 0.0
    %243 = vmatmul.mubr.f32.gmra.mrb[0].mxu0 %v171
    %v244 = vpop.f32.mrb[0].mxu0
    %v245 = vadd.f32 %v165, %v244
    %v246 = vpop.f32.mrb[0].mxu0
    %247 = vdwg.mxu0
    %v250 = vcombine.high %v240, %v240
    %v252 = vunpack.c.l.s4 1966171168
    %v253 = vunpack.c.0.s8 %v252
    %v254 = vlaneseq
    %v255 = vshrl.u32 %v254, 7
    %v256 = vsub.s32 %v253, %v255
    %v257 = vrot.slane %v240, %v256
    %v259 = vunpack.c.l.s4 1966171168
    %v260 = vunpack.c.0.s8 %v259
    %v261 = vlaneseq
    %v262 = vshrl.u32 %v261, 7
    %v263 = vsub.s32 %v260, %v262
    %v264 = vrot.slane %v250, %v263
    %v265 = vcombine.high %v257, %v257
    %v266 = vcombine.high %v264, %v264
    %v268 = vunpack.c.l.s4 1966171168
    %v269 = vunpack.c.0.s8 %v268
    %v270 = vlaneseq
    %v271 = vshrl.u32 %v270, 7
    %v272 = vsub.s32 %v269, %v271
    %v273 = vrot.slane %v257, %v272
    %v275 = vunpack.c.l.s4 1966171168
    %v276 = vunpack.c.0.s8 %v275
    %v277 = vlaneseq
    %v278 = vshrl.u32 %v277, 7
    %v279 = vsub.s32 %v276, %v278
    %v280 = vrot.slane %v264, %v279
    %v282 = vunpack.c.l.s4 1966171168
    %v283 = vunpack.c.0.s8 %v282
    %v284 = vlaneseq
    %v285 = vshrl.u32 %v284, 7
    %v286 = vsub.s32 %v283, %v285
    %v287 = vrot.slane %v265, %v286
    %v289 = vunpack.c.l.s4 1966171168
    %v290 = vunpack.c.0.s8 %v289
    %v291 = vlaneseq
    %v292 = vshrl.u32 %v291, 7
    %v293 = vsub.s32 %v290, %v292
    %v294 = vrot.slane %v266, %v293
    %v295 = vcombine.high %v273, %v273
    %v296 = vcombine.high %v280, %v280
    %v297 = vcombine.high %v287, %v287
    %v298 = vcombine.high %v294, %v294
    %v299 = vcombine.high %v245, %v245
    %v301 = vunpack.c.l.s4 1966171168
    %v302 = vunpack.c.0.s8 %v301
    %v303 = vlaneseq
    %v304 = vshrl.u32 %v303, 7
    %v305 = vsub.s32 %v302, %v304
    %v306 = vrot.slane %v245, %v305
    %v308 = vunpack.c.l.s4 1966171168
    %v309 = vunpack.c.0.s8 %v308
    %v310 = vlaneseq
    %v311 = vshrl.u32 %v310, 7
    %v312 = vsub.s32 %v309, %v311
    %v313 = vrot.slane %v299, %v312
    %v314 = vcombine.high %v306, %v306
    %v315 = vcombine.high %v313, %v313
    %v317 = vunpack.c.l.s4 1966171168
    %v318 = vunpack.c.0.s8 %v317
    %v319 = vlaneseq
    %v320 = vshrl.u32 %v319, 7
    %v321 = vsub.s32 %v318, %v320
    %v322 = vrot.slane %v306, %v321
    %v324 = vunpack.c.l.s4 1966171168
    %v325 = vunpack.c.0.s8 %v324
    %v326 = vlaneseq
    %v327 = vshrl.u32 %v326, 7
    %v328 = vsub.s32 %v325, %v327
    %v329 = vrot.slane %v313, %v328
    %v331 = vunpack.c.l.s4 1966171168
    %v332 = vunpack.c.0.s8 %v331
    %v333 = vlaneseq
    %v334 = vshrl.u32 %v333, 7
    %v335 = vsub.s32 %v332, %v334
    %v336 = vrot.slane %v314, %v335
    %v338 = vunpack.c.l.s4 1966171168
    %v339 = vunpack.c.0.s8 %v338
    %v340 = vlaneseq
    %v341 = vshrl.u32 %v340, 7
    %v342 = vsub.s32 %v339, %v341
    %v343 = vrot.slane %v315, %v342
    %v344 = vcombine.high %v322, %v322
    %v345 = vcombine.high %v329, %v329
    %v346 = vcombine.high %v336, %v336
    %v347 = vcombine.high %v343, %v343
    %v348 = vlaneseq
    %v349 = vshrl.u32 %v348, 7
    %v350 = vsub.s32 0, %v349
    %v351 = vrot.slane %v273, %v350
    %v352 = vlaneseq
    %v353 = vshrl.u32 %v352, 7
    %v354 = vsub.s32 0, %v353
    %v355 = vrot.slane %v287, %v354
    %v356 = vlaneseq
    %v357 = vshrl.u32 %v356, 7
    %v358 = vsub.s32 0, %v357
    %v359 = vrot.slane %v295, %v358
    %v360 = vlaneseq
    %v361 = vshrl.u32 %v360, 7
    %v362 = vsub.s32 0, %v361
    %v363 = vrot.slane %v297, %v362
    %v364 = vlaneseq
    %v365 = vshrl.u32 %v364, 7
    %v366 = vsub.s32 0, %v365
    %v367 = vrot.slane %v280, %v366
    %v368 = vlaneseq
    %v369 = vshrl.u32 %v368, 7
    %v370 = vsub.s32 0, %v369
    %v371 = vrot.slane %v294, %v370
    %v372 = vlaneseq
    %v373 = vshrl.u32 %v372, 7
    %v374 = vsub.s32 0, %v373
    %v375 = vrot.slane %v296, %v374
    %v376 = vlaneseq
    %v377 = vshrl.u32 %v376, 7
    %v378 = vsub.s32 0, %v377
    %v379 = vrot.slane %v298, %v378
    %v380 = vlaneseq
    %v381 = vshrl.u32 %v380, 7
    %v382 = vsub.s32 0, %v381
    %v383 = vrot.slane %v322, %v382
    %v384 = vlaneseq
    %v385 = vshrl.u32 %v384, 7
    %v386 = vsub.s32 0, %v385
    %v387 = vrot.slane %v336, %v386
    %v388 = vlaneseq
    %v389 = vshrl.u32 %v388, 7
    %v390 = vsub.s32 0, %v389
    %v391 = vrot.slane %v344, %v390
    %v392 = vlaneseq
    %v393 = vshrl.u32 %v392, 7
    %v394 = vsub.s32 0, %v393
    %v395 = vrot.slane %v346, %v394
    %v396 = vlaneseq
    %v397 = vshrl.u32 %v396, 7
    %v398 = vsub.s32 0, %v397
    %v399 = vrot.slane %v329, %v398
    %v400 = vlaneseq
    %v401 = vshrl.u32 %v400, 7
    %v402 = vsub.s32 0, %v401
    %v403 = vrot.slane %v343, %v402
    %v404 = vlaneseq
    %v405 = vshrl.u32 %v404, 7
    %v406 = vsub.s32 0, %v405
    %v407 = vrot.slane %v345, %v406
    %v408 = vlaneseq
    %v409 = vshrl.u32 %v408, 7
    %v410 = vsub.s32 0, %v409
    %v411 = vrot.slane %v347, %v410
    %428 = vrot.lane.b32.xlu0 %v240, 96
    %v429 = vpop.permute.xlu0 %428
    %430 = vrot.lane.b32.xlu0 %v245, 96
    %v431 = vpop.permute.xlu0 %430
    %v434 = vadd.f32 %v351, %v429
    %v435 = vadd.f32 %v355, %v429
    %v436 = vadd.f32 %v359, %v429
    %v437 = vadd.f32 %v363, %v429
    %v438 = vadd.f32 %v367, %v429
    %v439 = vadd.f32 %v371, %v429
    %v440 = vadd.f32 %v375, %v429
    %v441 = vadd.f32 %v379, %v429
    %v442 = vadd.f32 %v383, %v431
    %v443 = vadd.f32 %v387, %v431
    %v444 = vadd.f32 %v391, %v431
    %v445 = vadd.f32 %v395, %v431
    %v446 = vadd.f32 %v399, %v431
    %v447 = vadd.f32 %v403, %v431
    %v448 = vadd.f32 %v407, %v431
    %v449 = vadd.f32 %v411, %v431
    %v450 = vtanh.pop %v434
    %v451 = vtanh.pop %v435
    %v452 = vtanh.pop %v436
    %v453 = vtanh.pop %v437
    %v454 = vtanh.pop %v438
    %v455 = vtanh.pop %v439
    %v456 = vtanh.pop %v440
    %v457 = vtanh.pop %v441
    %v458 = vtanh.pop %v442
    %v459 = vtanh.pop %v443
    %v460 = vtanh.pop %v444
    %v461 = vtanh.pop %v445
    %v462 = vtanh.pop %v446
    %v463 = vtanh.pop %v447
    %v464 = vtanh.pop %v448
    %v465 = vtanh.pop %v449
    %v466 = vld [vmem:[%s6] sm:$0xff]
    %v467 = vld [vmem:[%s6 + $0x8] sm:$0xff]
    %v468 = vld [vmem:[%s6 + $0x10] sm:$0xff]
    %v469 = vld [vmem:[%s6 + $0x18] sm:$0xff]
    %v470 = vstv %s63
    %v472 = vsel %vm72, %v450, 0
    %v475 = vsel %vm72, %v451, 0
    %v478 = vsel %vm72, %v452, 0
    %v481 = vsel %vm72, %v453, 0
    %v484 = vsel %vm72, %v454, 0
    %v487 = vsel %vm72, %v455, 0
    %v490 = vsel %vm72, %v456, 0
    %v493 = vsel %vm72, %v457, 0
    %v496 = vsel %vm72, %v458, 0
    %v499 = vsel %vm72, %v459, 0
    %v502 = vsel %vm72, %v460, 0
    %v505 = vsel %vm72, %v461, 0
    %v508 = vsel %vm72, %v462, 0
    %v511 = vsel %vm72, %v463, 0
    %v514 = vsel %vm72, %v464, 0
    %v517 = vsel %vm72, %v465, 0
    %519 = vmatprep.subr.mxu0 0.0
    %520 = vmatpush1.msra.mxu0 %v466
    %521 = vmatprep.subr.mxu0 0.0
    %522 = vmatpush1.msra.mxu0 %v467
    %523 = vmatprep.subr.mxu0 0.0
    %524 = vmatpush1.msra.mxu0 %v468
    %525 = vmatprep.subr.mxu0 0.0
    %526 = vmatpush1.msra.mxu0 %v469
    %527 = vmatprep.subr.mxu0 0.0
    %528 = vmatpush1.msra.mxu0 0.0
    %529 = vmatprep.subr.mxu0 0.0
    %530 = vmatpush1.msra.mxu0 0.0
    %531 = vmatprep.subr.mxu0 0.0
    %532 = vmatpush1.msra.mxu0 0.0
    %533 = vmatprep.subr.mxu0 0.0
    %534 = vmatpush1.msra.mxu0 0.0
    %535 = vmatprep.subr.mxu0 0.0
    %536 = vmatpush1.msra.mxu0 0.0
    %537 = vmatprep.subr.mxu0 0.0
    %538 = vmatpush1.msra.mxu0 0.0
    %539 = vmatprep.subr.mxu0 0.0
    %540 = vmatpush1.msra.mxu0 0.0
    %541 = vmatprep.subr.mxu0 0.0
    %542 = vmatpush1.msra.mxu0 0.0
    %543 = vmatprep.subr.mxu0 0.0
    %544 = vmatpush1.msra.mxu0 0.0
    %545 = vmatprep.subr.mxu0 0.0
    %546 = vmatpush1.msra.mxu0 0.0
    %547 = vmatprep.subr.mxu0 0.0
    %548 = vmatpush1.msra.mxu0 0.0
    %549 = vmatprep.subr.mxu0 0.0
    %550 = vmatpush1.msra.mxu0 0.0
    %551 = vmatprep.subr.mxu0 0.0
    %552 = vmatpush1.msra.mxu0 0.0
    %553 = vmatprep.subr.mxu0 0.0
    %554 = vmatpush1.msra.mxu0 0.0
    %555 = vmatprep.subr.mxu0 0.0
    %556 = vmatpush1.msra.mxu0 0.0
    %557 = vmatprep.subr.mxu0 0.0
    %558 = vmatpush1.msra.mxu0 0.0
    %559 = vmatprep.subr.mxu0 0.0
    %560 = vmatpush1.msra.mxu0 0.0
    %561 = vmatprep.subr.mxu0 0.0
    %562 = vmatpush1.msra.mxu0 0.0
    %563 = vmatprep.subr.mxu0 0.0
    %564 = vmatpush1.msra.mxu0 0.0
    %565 = vmatprep.subr.mxu0 0.0
    %566 = vmatpush1.msra.mxu0 0.0
    %567 = vmatprep.subr.mxu0 0.0
    %568 = vmatpush1.msra.mxu0 0.0
    %569 = vmatprep.subr.mxu0 0.0
    %570 = vmatpush1.msra.mxu0 0.0
    %571 = vmatprep.subr.mxu0 0.0
    %572 = vmatpush1.msra.mxu0 0.0
    %573 = vmatprep.subr.mxu0 0.0
    %574 = vmatpush1.msra.mxu0 0.0
    %575 = vmatprep.subr.mxu0 0.0
    %576 = vmatpush1.msra.mxu0 0.0
    %577 = vmatprep.subr.mxu0 0.0
    %578 = vmatpush1.msra.mxu0 0.0
    %579 = vmatprep.subr.mxu0 0.0
    %580 = vmatpush1.msra.mxu0 0.0
    %581 = vmatprep.subr.mxu0 0.0
    %582 = vmatpush1.msra.mxu0 0.0
    %583 = vmatprep.mubr.f32.mxu0 0.0
    %584 = vmatmul.mubr.f32.gmra.mrb[0].mxu0 %v472
    %v585 = vpop.f32.mrb[0].mxu0
    %v586 = vadd.f32 %v470, %v585
    %v587 = vpop.f32.mrb[0].mxu0
    %588 = vmatprep.mubr.f32.mxu0 0.0
    %589 = vmatmul.mubr.f32.gmra.mrb[0].mxu0 %v475
    %v590 = vpop.f32.mrb[0].mxu0
    %v591 = vadd.f32 %v470, %v590
    %v592 = vpop.f32.mrb[0].mxu0
    %593 = vmatprep.mubr.f32.mxu0 0.0
    %594 = vmatmul.mubr.f32.gmra.mrb[0].mxu0 %v478
    %v595 = vpop.f32.mrb[0].mxu0
    %v596 = vadd.f32 %v470, %v595
    %v597 = vpop.f32.mrb[0].mxu0
    %598 = vmatprep.mubr.f32.mxu0 0.0
    %599 = vmatmul.mubr.f32.gmra.mrb[0].mxu0 %v481
    %v600 = vpop.f32.mrb[0].mxu0
    %v601 = vadd.f32 %v470, %v600
    %v602 = vpop.f32.mrb[0].mxu0
    %603 = vmatprep.mubr.f32.mxu0 0.0
    %604 = vmatmul.mubr.f32.gmra.mrb[0].mxu0 %v484
    %v605 = vpop.f32.mrb[0].mxu0
    %v606 = vadd.f32 %v470, %v605
    %v607 = vpop.f32.mrb[0].mxu0
    %608 = vmatprep.mubr.f32.mxu0 0.0
    %609 = vmatmul.mubr.f32.gmra.mrb[0].mxu0 %v487
    %v610 = vpop.f32.mrb[0].mxu0
    %v611 = vadd.f32 %v470, %v610
    %v612 = vpop.f32.mrb[0].mxu0
    %613 = vmatprep.mubr.f32.mxu0 0.0
    %614 = vmatmul.mubr.f32.gmra.mrb[0].mxu0 %v490
    %v615 = vpop.f32.mrb[0].mxu0
    %v616 = vadd.f32 %v470, %v615
    %v617 = vpop.f32.mrb[0].mxu0
    %618 = vmatprep.mubr.f32.mxu0 0.0
    %619 = vmatmul.mubr.f32.gmra.mrb[0].mxu0 %v493
    %v620 = vpop.f32.mrb[0].mxu0
    %v621 = vadd.f32 %v470, %v620
    %v622 = vpop.f32.mrb[0].mxu0
    %623 = vmatprep.mubr.f32.mxu0 0.0
    %624 = vmatmul.mubr.f32.gmra.mrb[0].mxu0 %v496
    %v625 = vpop.f32.mrb[0].mxu0
    %v626 = vadd.f32 %v470, %v625
    %v627 = vpop.f32.mrb[0].mxu0
    %628 = vmatprep.mubr.f32.mxu0 0.0
    %629 = vmatmul.mubr.f32.gmra.mrb[0].mxu0 %v499
    %v630 = vpop.f32.mrb[0].mxu0
    %v631 = vadd.f32 %v470, %v630
    %v632 = vpop.f32.mrb[0].mxu0
    %633 = vmatprep.mubr.f32.mxu0 0.0
    %634 = vmatmul.mubr.f32.gmra.mrb[0].mxu0 %v502
    %v635 = vpop.f32.mrb[0].mxu0
    %v636 = vadd.f32 %v470, %v635
    %v637 = vpop.f32.mrb[0].mxu0
    %638 = vmatprep.mubr.f32.mxu0 0.0
    %639 = vmatmul.mubr.f32.gmra.mrb[0].mxu0 %v505
    %v640 = vpop.f32.mrb[0].mxu0
    %v641 = vadd.f32 %v470, %v640
    %v642 = vpop.f32.mrb[0].mxu0
    %643 = vmatprep.mubr.f32.mxu0 0.0
    %644 = vmatmul.mubr.f32.gmra.mrb[0].mxu0 %v508
    %v645 = vpop.f32.mrb[0].mxu0
    %v646 = vadd.f32 %v470, %v645
    %v647 = vpop.f32.mrb[0].mxu0
    %648 = vmatprep.mubr.f32.mxu0 0.0
    %649 = vmatmul.mubr.f32.gmra.mrb[0].mxu0 %v511
    %v650 = vpop.f32.mrb[0].mxu0
    %v651 = vadd.f32 %v470, %v650
    %v652 = vpop.f32.mrb[0].mxu0
    %653 = vmatprep.mubr.f32.mxu0 0.0
    %654 = vmatmul.mubr.f32.gmra.mrb[0].mxu0 %v514
    %v655 = vpop.f32.mrb[0].mxu0
    %v656 = vadd.f32 %v470, %v655
    %v657 = vpop.f32.mrb[0].mxu0
    %658 = vmatprep.mubr.f32.mxu0 0.0
    %659 = vmatmul.mubr.f32.gmra.mrb[0].mxu0 %v517
    %v660 = vpop.f32.mrb[0].mxu0
    %v661 = vadd.f32 %v470, %v660
    %v662 = vpop.f32.mrb[0].mxu0
    %663 = vdwg.mxu0
    %v664 = vlaneseq
    %v665 = vshrl.u32 %v664, 7
    %v666 = vsub.s32 0, %v665
    %v667 = vrot.slane %v52, %v666
    %669 = vbcast.lane.b32.xlu0 %v667, 256
    %v670 = vpop.permute.xlu0 %669
    %v671 = vlaneseq
    %v672 = vshrl.u32 %v671, 7
    %v673 = vsub.s32 1, %v672
    %v674 = vrot.slane %v52, %v673
    %676 = vbcast.lane.b32.xlu0 %v674, 256
    %v677 = vpop.permute.xlu0 %676
    %vm678 = vcmp.eq.f32.partialorder %v670, 0.0
    %vm679 = vcmp.eq.f32.partialorder %v677, 0.0
    %v680 = vsel %vm678, 1, 0
    %v681 = vsel %vm679, 1, 0
    %vm682 = vcmp.eq.s32.totalorder %v680, 1
    %vm683 = vcmp.eq.s32.totalorder %v681, 1
    %v684 = vsel %vm682, -1e+10, %v586
    %v685 = vsel %vm682, -1e+10, %v591
    %v686 = vsel %vm682, -1e+10, %v596
    %v687 = vsel %vm682, -1e+10, %v601
    %v688 = vsel %vm682, -1e+10, %v606
    %v689 = vsel %vm682, -1e+10, %v611
    %v690 = vsel %vm682, -1e+10, %v616
    %v691 = vsel %vm682, -1e+10, %v621
    %v692 = vsel %vm683, -1e+10, %v626
    %v693 = vsel %vm683, -1e+10, %v631
    %v694 = vsel %vm683, -1e+10, %v636
    %v695 = vsel %vm683, -1e+10, %v641
    %v696 = vsel %vm683, -1e+10, %v646
    %v697 = vsel %vm683, -1e+10, %v651
    %v698 = vsel %vm683, -1e+10, %v656
    %v699 = vsel %vm683, -1e+10, %v661
    %vm700 = vcmask 31744
    %v701 = vsel %vm700, %v684, -inf
    %v702 = vrot.slane %v701, 4
    %v703 = vmax.f32 %v701, %v702
    %v704 = vrot.slane %v703, 2
    %v705 = vmax.f32 %v703, %v704
    %v706 = vrot.slane %v705, 1
    %v707 = vmax.f32 %v705, %v706
    %v708 = vsel %vm700, %v685, -inf
    %v709 = vrot.slane %v708, 4
    %v710 = vmax.f32 %v708, %v709
    %v711 = vrot.slane %v710, 2
    %v712 = vmax.f32 %v710, %v711
    %v713 = vrot.slane %v712, 1
    %v714 = vmax.f32 %v712, %v713
    %v715 = vsel %vm700, %v686, -inf
    %v716 = vrot.slane %v715, 4
    %v717 = vmax.f32 %v715, %v716
    %v718 = vrot.slane %v717, 2
    %v719 = vmax.f32 %v717, %v718
    %v720 = vrot.slane %v719, 1
    %v721 = vmax.f32 %v719, %v720
    %v722 = vsel %vm700, %v687, -inf
    %v723 = vrot.slane %v722, 4
    %v724 = vmax.f32 %v722, %v723
    %v725 = vrot.slane %v724, 2
    %v726 = vmax.f32 %v724, %v725
    %v727 = vrot.slane %v726, 1
    %v728 = vmax.f32 %v726, %v727
    %v729 = vsel %vm700, %v688, -inf
    %v730 = vrot.slane %v729, 4
    %v731 = vmax.f32 %v729, %v730
    %v732 = vrot.slane %v731, 2
    %v733 = vmax.f32 %v731, %v732
    %v734 = vrot.slane %v733, 1
    %v735 = vmax.f32 %v733, %v734
    %v736 = vsel %vm700, %v689, -inf
    %v737 = vrot.slane %v736, 4
    %v738 = vmax.f32 %v736, %v737
    %v739 = vrot.slane %v738, 2
    %v740 = vmax.f32 %v738, %v739
    %v741 = vrot.slane %v740, 1
    %v742 = vmax.f32 %v740, %v741
    %v743 = vsel %vm700, %v690, -inf
    %v744 = vrot.slane %v743, 4
    %v745 = vmax.f32 %v743, %v744
    %v746 = vrot.slane %v745, 2
    %v747 = vmax.f32 %v745, %v746
    %v748 = vrot.slane %v747, 1
    %v749 = vmax.f32 %v747, %v748
    %v750 = vsel %vm700, %v691, -inf
    %v751 = vrot.slane %v750, 4
    %v752 = vmax.f32 %v750, %v751
    %v753 = vrot.slane %v752, 2
    %v754 = vmax.f32 %v752, %v753
    %v755 = vrot.slane %v754, 1
    %v756 = vmax.f32 %v754, %v755
    %v757 = vsel %vm700, %v692, -inf
    %v758 = vrot.slane %v757, 4
    %v759 = vmax.f32 %v757, %v758
    %v760 = vrot.slane %v759, 2
    %v761 = vmax.f32 %v759, %v760
    %v762 = vrot.slane %v761, 1
    %v763 = vmax.f32 %v761, %v762
    %v764 = vsel %vm700, %v693, -inf
    %v765 = vrot.slane %v764, 4
    %v766 = vmax.f32 %v764, %v765
    %v767 = vrot.slane %v766, 2
    %v768 = vmax.f32 %v766, %v767
    %v769 = vrot.slane %v768, 1
    %v770 = vmax.f32 %v768, %v769
    %v771 = vsel %vm700, %v694, -inf
    %v772 = vrot.slane %v771, 4
    %v773 = vmax.f32 %v771, %v772
    %v774 = vrot.slane %v773, 2
    %v775 = vmax.f32 %v773, %v774
    %v776 = vrot.slane %v775, 1
    %v777 = vmax.f32 %v775, %v776
    %v778 = vsel %vm700, %v695, -inf
    %v779 = vrot.slane %v778, 4
    %v780 = vmax.f32 %v778, %v779
    %v781 = vrot.slane %v780, 2
    %v782 = vmax.f32 %v780, %v781
    %v783 = vrot.slane %v782, 1
    %v784 = vmax.f32 %v782, %v783
    %v785 = vsel %vm700, %v696, -inf
    %v786 = vrot.slane %v785, 4
    %v787 = vmax.f32 %v785, %v786
    %v788 = vrot.slane %v787, 2
    %v789 = vmax.f32 %v787, %v788
    %v790 = vrot.slane %v789, 1
    %v791 = vmax.f32 %v789, %v790
    %v792 = vsel %vm700, %v697, -inf
    %v793 = vrot.slane %v792, 4
    %v794 = vmax.f32 %v792, %v793
    %v795 = vrot.slane %v794, 2
    %v796 = vmax.f32 %v794, %v795
    %v797 = vrot.slane %v796, 1
    %v798 = vmax.f32 %v796, %v797
    %v799 = vsel %vm700, %v698, -inf
    %v800 = vrot.slane %v799, 4
    %v801 = vmax.f32 %v799, %v800
    %v802 = vrot.slane %v801, 2
    %v803 = vmax.f32 %v801, %v802
    %v804 = vrot.slane %v803, 1
    %v805 = vmax.f32 %v803, %v804
    %v806 = vsel %vm700, %v699, -inf
    %v807 = vrot.slane %v806, 4
    %v808 = vmax.f32 %v806, %v807
    %v809 = vrot.slane %v808, 2
    %v810 = vmax.f32 %v808, %v809
    %v811 = vrot.slane %v810, 1
    %v812 = vmax.f32 %v810, %v811
    %v813 = vsub.f32 %v684, %v707
    %v814 = vsub.f32 %v685, %v714
    %v815 = vsub.f32 %v686, %v721
    %v816 = vsub.f32 %v687, %v728
    %v817 = vsub.f32 %v688, %v735
    %v818 = vsub.f32 %v689, %v742
    %v819 = vsub.f32 %v690, %v749
    %v820 = vsub.f32 %v691, %v756
    %v821 = vsub.f32 %v692, %v763
    %v822 = vsub.f32 %v693, %v770
    %v823 = vsub.f32 %v694, %v777
    %v824 = vsub.f32 %v695, %v784
    %v825 = vsub.f32 %v696, %v791
    %v826 = vsub.f32 %v697, %v798
    %v827 = vsub.f32 %v698, %v805
    %v828 = vsub.f32 %v699, %v812
    %v829 = vmul.f32 %v813, 1.442695
    %v830 = vpow.pop %v829
    %v831 = vmul.f32 %v814, 1.442695
    %v832 = vpow.pop %v831
    %v833 = vmul.f32 %v815, 1.442695
    %v834 = vpow.pop %v833
    %v835 = vmul.f32 %v816, 1.442695
    %v836 = vpow.pop %v835
    %v837 = vmul.f32 %v817, 1.442695
    %v838 = vpow.pop %v837
    %v839 = vmul.f32 %v818, 1.442695
    %v840 = vpow.pop %v839
    %v841 = vmul.f32 %v819, 1.442695
    %v842 = vpow.pop %v841
    %v843 = vmul.f32 %v820, 1.442695
    %v844 = vpow.pop %v843
    %v845 = vmul.f32 %v821, 1.442695
    %v846 = vpow.pop %v845
    %v847 = vmul.f32 %v822, 1.442695
    %v848 = vpow.pop %v847
    %v849 = vmul.f32 %v823, 1.442695
    %v850 = vpow.pop %v849
    %v851 = vmul.f32 %v824, 1.442695
    %v852 = vpow.pop %v851
    %v853 = vmul.f32 %v825, 1.442695
    %v854 = vpow.pop %v853
    %v855 = vmul.f32 %v826, 1.442695
    %v856 = vpow.pop %v855
    %v857 = vmul.f32 %v827, 1.442695
    %v858 = vpow.pop %v857
    %v859 = vmul.f32 %v828, 1.442695
    %v860 = vpow.pop %v859
    %v861 = vsel %vm700, %v830, 0.0
    %v862 = vrot.slane %v861, 4
    %v863 = vadd.f32 %v861, %v862
    %v864 = vrot.slane %v863, 2
    %v865 = vadd.f32 %v863, %v864
    %v866 = vrot.slane %v865, 1
    %v867 = vadd.f32 %v865, %v866
    %v868 = vsel %vm700, %v832, 0.0
    %v869 = vrot.slane %v868, 4
    %v870 = vadd.f32 %v868, %v869
    %v871 = vrot.slane %v870, 2
    %v872 = vadd.f32 %v870, %v871
    %v873 = vrot.slane %v872, 1
    %v874 = vadd.f32 %v872, %v873
    %v875 = vsel %vm700, %v834, 0.0
    %v876 = vrot.slane %v875, 4
    %v877 = vadd.f32 %v875, %v876
    %v878 = vrot.slane %v877, 2
    %v879 = vadd.f32 %v877, %v878
    %v880 = vrot.slane %v879, 1
    %v881 = vadd.f32 %v879, %v880
    %v882 = vsel %vm700, %v836, 0.0
    %v883 = vrot.slane %v882, 4
    %v884 = vadd.f32 %v882, %v883
    %v885 = vrot.slane %v884, 2
    %v886 = vadd.f32 %v884, %v885
    %v887 = vrot.slane %v886, 1
    %v888 = vadd.f32 %v886, %v887
    %v889 = vsel %vm700, %v838, 0.0
    %v890 = vrot.slane %v889, 4
    %v891 = vadd.f32 %v889, %v890
    %v892 = vrot.slane %v891, 2
    %v893 = vadd.f32 %v891, %v892
    %v894 = vrot.slane %v893, 1
    %v895 = vadd.f32 %v893, %v894
    %v896 = vsel %vm700, %v840, 0.0
    %v897 = vrot.slane %v896, 4
    %v898 = vadd.f32 %v896, %v897
    %v899 = vrot.slane %v898, 2
    %v900 = vadd.f32 %v898, %v899
    %v901 = vrot.slane %v900, 1
    %v902 = vadd.f32 %v900, %v901
    %v903 = vsel %vm700, %v842, 0.0
    %v904 = vrot.slane %v903, 4
    %v905 = vadd.f32 %v903, %v904
    %v906 = vrot.slane %v905, 2
    %v907 = vadd.f32 %v905, %v906
    %v908 = vrot.slane %v907, 1
    %v909 = vadd.f32 %v907, %v908
    %v910 = vsel %vm700, %v844, 0.0
    %v911 = vrot.slane %v910, 4
    %v912 = vadd.f32 %v910, %v911
    %v913 = vrot.slane %v912, 2
    %v914 = vadd.f32 %v912, %v913
    %v915 = vrot.slane %v914, 1
    %v916 = vadd.f32 %v914, %v915
    %v917 = vsel %vm700, %v846, 0.0
    %v918 = vrot.slane %v917, 4
    %v919 = vadd.f32 %v917, %v918
    %v920 = vrot.slane %v919, 2
    %v921 = vadd.f32 %v919, %v920
    %v922 = vrot.slane %v921, 1
    %v923 = vadd.f32 %v921, %v922
    %v924 = vsel %vm700, %v848, 0.0
    %v925 = vrot.slane %v924, 4
    %v926 = vadd.f32 %v924, %v925
    %v927 = vrot.slane %v926, 2
    %v928 = vadd.f32 %v926, %v927
    %v929 = vrot.slane %v928, 1
    %v930 = vadd.f32 %v928, %v929
    %v931 = vsel %vm700, %v850, 0.0
    %v932 = vrot.slane %v931, 4
    %v933 = vadd.f32 %v931, %v932
    %v934 = vrot.slane %v933, 2
    %v935 = vadd.f32 %v933, %v934
    %v936 = vrot.slane %v935, 1
    %v937 = vadd.f32 %v935, %v936
    %v938 = vsel %vm700, %v852, 0.0
    %v939 = vrot.slane %v938, 4
    %v940 = vadd.f32 %v938, %v939
    %v941 = vrot.slane %v940, 2
    %v942 = vadd.f32 %v940, %v941
    %v943 = vrot.slane %v942, 1
    %v944 = vadd.f32 %v942, %v943
    %v945 = vsel %vm700, %v854, 0.0
    %v946 = vrot.slane %v945, 4
    %v947 = vadd.f32 %v945, %v946
    %v948 = vrot.slane %v947, 2
    %v949 = vadd.f32 %v947, %v948
    %v950 = vrot.slane %v949, 1
    %v951 = vadd.f32 %v949, %v950
    %v952 = vsel %vm700, %v856, 0.0
    %v953 = vrot.slane %v952, 4
    %v954 = vadd.f32 %v952, %v953
    %v955 = vrot.slane %v954, 2
    %v956 = vadd.f32 %v954, %v955
    %v957 = vrot.slane %v956, 1
    %v958 = vadd.f32 %v956, %v957
    %v959 = vsel %vm700, %v858, 0.0
    %v960 = vrot.slane %v959, 4
    %v961 = vadd.f32 %v959, %v960
    %v962 = vrot.slane %v961, 2
    %v963 = vadd.f32 %v961, %v962
    %v964 = vrot.slane %v963, 1
    %v965 = vadd.f32 %v963, %v964
    %v966 = vsel %vm700, %v860, 0.0
    %v967 = vrot.slane %v966, 4
    %v968 = vadd.f32 %v966, %v967
    %v969 = vrot.slane %v968, 2
    %v970 = vadd.f32 %v968, %v969
    %v971 = vrot.slane %v970, 1
    %v972 = vadd.f32 %v970, %v971
    %v973 = vrcp.pop %v867
    %v974 = vrcp.pop %v874
    %v975 = vrcp.pop %v881
    %v976 = vrcp.pop %v888
    %v977 = vrcp.pop %v895
    %v978 = vrcp.pop %v902
    %v979 = vrcp.pop %v909
    %v980 = vrcp.pop %v916
    %v981 = vrcp.pop %v923
    %v982 = vrcp.pop %v930
    %v983 = vrcp.pop %v937
    %v984 = vrcp.pop %v944
    %v985 = vrcp.pop %v951
    %v986 = vrcp.pop %v958
    %v987 = vrcp.pop %v965
    %v988 = vrcp.pop %v972
    %v989 = vmul.f32 %v830, %v973
    %v990 = vmul.f32 %v832, %v974
    %v991 = vmul.f32 %v834, %v975
    %v992 = vmul.f32 %v836, %v976
    %v993 = vmul.f32 %v838, %v977
    %v994 = vmul.f32 %v840, %v978
    %v995 = vmul.f32 %v842, %v979
    %v996 = vmul.f32 %v844, %v980
    %v997 = vmul.f32 %v846, %v981
    %v998 = vmul.f32 %v848, %v982
    %v999 = vmul.f32 %v850, %v983
    %v1000 = vmul.f32 %v852, %v984
    %v1001 = vmul.f32 %v854, %v985
    %v1002 = vmul.f32 %v856, %v986
    %v1003 = vmul.f32 %v858, %v987
    %v1004 = vmul.f32 %v860, %v988
    %v1005 = vld [vmem:[%s7] sm:$0xf]
    %v1007 = vsel %vm700, %v989, 0
    %v1010 = vsel %vm700, %v990, 0
    %v1013 = vsel %vm700, %v991, 0
    %v1016 = vsel %vm700, %v992, 0
    %v1019 = vsel %vm700, %v993, 0
    %v1022 = vsel %vm700, %v994, 0
    %v1025 = vsel %vm700, %v995, 0
    %v1028 = vsel %vm700, %v996, 0
    %v1031 = vsel %vm700, %v997, 0
    %v1034 = vsel %vm700, %v998, 0
    %v1037 = vsel %vm700, %v999, 0
    %v1040 = vsel %vm700, %v1000, 0
    %v1043 = vsel %vm700, %v1001, 0
    %v1046 = vsel %vm700, %v1002, 0
    %v1049 = vsel %vm700, %v1003, 0
    %v1052 = vsel %vm700, %v1004, 0
    %vm1054 = vcmask 1043456
    %v1056 = vsel %vm1054, %v1005, 0
    %1058 = vmatprep.subr.mxu0 0.0
    %1059 = vmatpush1.msra.mxu0 %v1056
    %1060 = vmatprep.subr.mxu0 0.0
    %1061 = vmatpush1.msra.mxu0 0.0
    %1062 = vmatprep.subr.mxu0 0.0
    %1063 = vmatpush1.msra.mxu0 0.0
    %1064 = vmatprep.subr.mxu0 0.0
    %1065 = vmatpush1.msra.mxu0 0.0
    %1066 = vmatprep.subr.mxu0 0.0
    %1067 = vmatpush1.msra.mxu0 0.0
    %1068 = vmatprep.subr.mxu0 0.0
    %1069 = vmatpush1.msra.mxu0 0.0
    %1070 = vmatprep.subr.mxu0 0.0
    %1071 = vmatpush1.msra.mxu0 0.0
    %1072 = vmatprep.subr.mxu0 0.0
    %1073 = vmatpush1.msra.mxu0 0.0
    %1074 = vmatprep.subr.mxu0 0.0
    %1075 = vmatpush1.msra.mxu0 0.0
    %1076 = vmatprep.subr.mxu0 0.0
    %1077 = vmatpush1.msra.mxu0 0.0
    %1078 = vmatprep.subr.mxu0 0.0
    %1079 = vmatpush1.msra.mxu0 0.0
    %1080 = vmatprep.subr.mxu0 0.0
    %1081 = vmatpush1.msra.mxu0 0.0
    %1082 = vmatprep.subr.mxu0 0.0
    %1083 = vmatpush1.msra.mxu0 0.0
    %1084 = vmatprep.subr.mxu0 0.0
    %1085 = vmatpush1.msra.mxu0 0.0
    %1086 = vmatprep.subr.mxu0 0.0
    %1087 = vmatpush1.msra.mxu0 0.0
    %1088 = vmatprep.subr.mxu0 0.0
    %1089 = vmatpush1.msra.mxu0 0.0
    %1090 = vmatprep.subr.mxu0 0.0
    %1091 = vmatpush1.msra.mxu0 0.0
    %1092 = vmatprep.subr.mxu0 0.0
    %1093 = vmatpush1.msra.mxu0 0.0
    %1094 = vmatprep.subr.mxu0 0.0
    %1095 = vmatpush1.msra.mxu0 0.0
    %1096 = vmatprep.subr.mxu0 0.0
    %1097 = vmatpush1.msra.mxu0 0.0
    %1098 = vmatprep.subr.mxu0 0.0
    %1099 = vmatpush1.msra.mxu0 0.0
    %1100 = vmatprep.subr.mxu0 0.0
    %1101 = vmatpush1.msra.mxu0 0.0
    %1102 = vmatprep.subr.mxu0 0.0
    %1103 = vmatpush1.msra.mxu0 0.0
    %1104 = vmatprep.subr.mxu0 0.0
    %1105 = vmatpush1.msra.mxu0 0.0
    %1106 = vmatprep.subr.mxu0 0.0
    %1107 = vmatpush1.msra.mxu0 0.0
    %1108 = vmatprep.subr.mxu0 0.0
    %1109 = vmatpush1.msra.mxu0 0.0
    %1110 = vmatprep.subr.mxu0 0.0
    %1111 = vmatpush1.msra.mxu0 0.0
    %1112 = vmatprep.subr.mxu0 0.0
    %1113 = vmatpush1.msra.mxu0 0.0
    %1114 = vmatprep.subr.mxu0 0.0
    %1115 = vmatpush1.msra.mxu0 0.0
    %1116 = vmatprep.subr.mxu0 0.0
    %1117 = vmatpush1.msra.mxu0 0.0
    %1118 = vmatprep.subr.mxu0 0.0
    %1119 = vmatpush1.msra.mxu0 0.0
    %1120 = vmatprep.subr.mxu0 0.0
    %1121 = vmatpush1.msra.mxu0 0.0
    %1122 = vmatprep.mubr.f32.mxu0 0.0
    %1123 = vmatmul.mubr.f32.gmra.mrb[0].mxu0 %v1007
    %v1124 = vpop.f32.mrb[0].mxu0
    %v1125 = vadd.f32 0.0, %v1124
    %v1126 = vpop.f32.mrb[0].mxu0
    %1127 = vmatprep.mubr.f32.mxu0 0.0
    %1128 = vmatmul.mubr.f32.gmra.mrb[0].mxu0 %v1010
    %v1129 = vpop.f32.mrb[0].mxu0
    %v1130 = vadd.f32 0.0, %v1129
    %v1131 = vpop.f32.mrb[0].mxu0
    %1132 = vmatprep.mubr.f32.mxu0 0.0
    %1133 = vmatmul.mubr.f32.gmra.mrb[0].mxu0 %v1013
    %v1134 = vpop.f32.mrb[0].mxu0
    %v1135 = vadd.f32 0.0, %v1134
    %v1136 = vpop.f32.mrb[0].mxu0
    %1137 = vmatprep.mubr.f32.mxu0 0.0
    %1138 = vmatmul.mubr.f32.gmra.mrb[0].mxu0 %v1016
    %v1139 = vpop.f32.mrb[0].mxu0
    %v1140 = vadd.f32 0.0, %v1139
    %v1141 = vpop.f32.mrb[0].mxu0
    %1142 = vmatprep.mubr.f32.mxu0 0.0
    %1143 = vmatmul.mubr.f32.gmra.mrb[0].mxu0 %v1019
    %v1144 = vpop.f32.mrb[0].mxu0
    %v1145 = vadd.f32 0.0, %v1144
    %v1146 = vpop.f32.mrb[0].mxu0
    %1147 = vmatprep.mubr.f32.mxu0 0.0
    %1148 = vmatmul.mubr.f32.gmra.mrb[0].mxu0 %v1022
    %v1149 = vpop.f32.mrb[0].mxu0
    %v1150 = vadd.f32 0.0, %v1149
    %v1151 = vpop.f32.mrb[0].mxu0
    %1152 = vmatprep.mubr.f32.mxu0 0.0
    %1153 = vmatmul.mubr.f32.gmra.mrb[0].mxu0 %v1025
    %v1154 = vpop.f32.mrb[0].mxu0
    %v1155 = vadd.f32 0.0, %v1154
    %v1156 = vpop.f32.mrb[0].mxu0
    %1157 = vmatprep.mubr.f32.mxu0 0.0
    %1158 = vmatmul.mubr.f32.gmra.mrb[0].mxu0 %v1028
    %v1159 = vpop.f32.mrb[0].mxu0
    %v1160 = vadd.f32 0.0, %v1159
    %v1161 = vpop.f32.mrb[0].mxu0
    %1162 = vmatprep.mubr.f32.mxu0 0.0
    %1163 = vmatmul.mubr.f32.gmra.mrb[0].mxu0 %v1031
    %v1164 = vpop.f32.mrb[0].mxu0
    %v1165 = vadd.f32 0.0, %v1164
    %v1166 = vpop.f32.mrb[0].mxu0
    %1167 = vmatprep.mubr.f32.mxu0 0.0
    %1168 = vmatmul.mubr.f32.gmra.mrb[0].mxu0 %v1034
    %v1169 = vpop.f32.mrb[0].mxu0
    %v1170 = vadd.f32 0.0, %v1169
    %v1171 = vpop.f32.mrb[0].mxu0
    %1172 = vmatprep.mubr.f32.mxu0 0.0
    %1173 = vmatmul.mubr.f32.gmra.mrb[0].mxu0 %v1037
    %v1174 = vpop.f32.mrb[0].mxu0
    %v1175 = vadd.f32 0.0, %v1174
    %v1176 = vpop.f32.mrb[0].mxu0
    %1177 = vmatprep.mubr.f32.mxu0 0.0
    %1178 = vmatmul.mubr.f32.gmra.mrb[0].mxu0 %v1040
    %v1179 = vpop.f32.mrb[0].mxu0
    %v1180 = vadd.f32 0.0, %v1179
    %v1181 = vpop.f32.mrb[0].mxu0
    %1182 = vmatprep.mubr.f32.mxu0 0.0
    %1183 = vmatmul.mubr.f32.gmra.mrb[0].mxu0 %v1043
    %v1184 = vpop.f32.mrb[0].mxu0
    %v1185 = vadd.f32 0.0, %v1184
    %v1186 = vpop.f32.mrb[0].mxu0
    %1187 = vmatprep.mubr.f32.mxu0 0.0
    %1188 = vmatmul.mubr.f32.gmra.mrb[0].mxu0 %v1046
    %v1189 = vpop.f32.mrb[0].mxu0
    %v1190 = vadd.f32 0.0, %v1189
    %v1191 = vpop.f32.mrb[0].mxu0
    %1192 = vmatprep.mubr.f32.mxu0 0.0
    %1193 = vmatmul.mubr.f32.gmra.mrb[0].mxu0 %v1049
    %v1194 = vpop.f32.mrb[0].mxu0
    %v1195 = vadd.f32 0.0, %v1194
    %v1196 = vpop.f32.mrb[0].mxu0
    %1197 = vmatprep.mubr.f32.mxu0 0.0
    %1198 = vmatmul.mubr.f32.gmra.mrb[0].mxu0 %v1052
    %v1199 = vpop.f32.mrb[0].mxu0
    %v1200 = vadd.f32 0.0, %v1199
    %v1201 = vpop.f32.mrb[0].mxu0
    %1202 = vdwg.mxu0
    %1203 = vrot.lane.b32.xlu0 %v146, 64
    %v1204 = vpop.permute.xlu0 %1203
    %1205 = vrot.lane.b32.xlu0 %v151, 64
    %v1206 = vpop.permute.xlu0 %1205
    %v1209 = vmul.f32 %v1125, %v1204
    %v1210 = vmul.f32 %v1130, %v1204
    %v1211 = vmul.f32 %v1135, %v1204
    %v1212 = vmul.f32 %v1140, %v1204
    %v1213 = vmul.f32 %v1145, %v1204
    %v1214 = vmul.f32 %v1150, %v1204
    %v1215 = vmul.f32 %v1155, %v1204
    %v1216 = vmul.f32 %v1160, %v1204
    %v1217 = vmul.f32 %v1165, %v1206
    %v1218 = vmul.f32 %v1170, %v1206
    %v1219 = vmul.f32 %v1175, %v1206
    %v1220 = vmul.f32 %v1180, %v1206
    %v1221 = vmul.f32 %v1185, %v1206
    %v1222 = vmul.f32 %v1190, %v1206
    %v1223 = vmul.f32 %v1195, %v1206
    %v1224 = vmul.f32 %v1200, %v1206
    %v1225 = vsel %vm72, %v1209, 0.0
    %v1226 = vrot.slane %v1225, 4
    %v1227 = vadd.f32 %v1225, %v1226
    %v1228 = vrot.slane %v1227, 2
    %v1229 = vadd.f32 %v1227, %v1228
    %v1230 = vrot.slane %v1229, 1
    %v1231 = vadd.f32 %v1229, %v1230
    %v1232 = vsel %vm72, %v1210, 0.0
    %v1233 = vrot.slane %v1232, 4
    %v1234 = vadd.f32 %v1232, %v1233
    %v1235 = vrot.slane %v1234, 2
    %v1236 = vadd.f32 %v1234, %v1235
    %v1237 = vrot.slane %v1236, 1
    %v1238 = vadd.f32 %v1236, %v1237
    %v1239 = vsel %vm72, %v1211, 0.0
    %v1240 = vrot.slane %v1239, 4
    %v1241 = vadd.f32 %v1239, %v1240
    %v1242 = vrot.slane %v1241, 2
    %v1243 = vadd.f32 %v1241, %v1242
    %v1244 = vrot.slane %v1243, 1
    %v1245 = vadd.f32 %v1243, %v1244
    %v1246 = vsel %vm72, %v1212, 0.0
    %v1247 = vrot.slane %v1246, 4
    %v1248 = vadd.f32 %v1246, %v1247
    %v1249 = vrot.slane %v1248, 2
    %v1250 = vadd.f32 %v1248, %v1249
    %v1251 = vrot.slane %v1250, 1
    %v1252 = vadd.f32 %v1250, %v1251
    %v1253 = vsel %vm72, %v1213, 0.0
    %v1254 = vrot.slane %v1253, 4
    %v1255 = vadd.f32 %v1253, %v1254
    %v1256 = vrot.slane %v1255, 2
    %v1257 = vadd.f32 %v1255, %v1256
    %v1258 = vrot.slane %v1257, 1
    %v1259 = vadd.f32 %v1257, %v1258
    %v1260 = vsel %vm72, %v1214, 0.0
    %v1261 = vrot.slane %v1260, 4
    %v1262 = vadd.f32 %v1260, %v1261
    %v1263 = vrot.slane %v1262, 2
    %v1264 = vadd.f32 %v1262, %v1263
    %v1265 = vrot.slane %v1264, 1
    %v1266 = vadd.f32 %v1264, %v1265
    %v1267 = vsel %vm72, %v1215, 0.0
    %v1268 = vrot.slane %v1267, 4
    %v1269 = vadd.f32 %v1267, %v1268
    %v1270 = vrot.slane %v1269, 2
    %v1271 = vadd.f32 %v1269, %v1270
    %v1272 = vrot.slane %v1271, 1
    %v1273 = vadd.f32 %v1271, %v1272
    %v1274 = vsel %vm72, %v1216, 0.0
    %v1275 = vrot.slane %v1274, 4
    %v1276 = vadd.f32 %v1274, %v1275
    %v1277 = vrot.slane %v1276, 2
    %v1278 = vadd.f32 %v1276, %v1277
    %v1279 = vrot.slane %v1278, 1
    %v1280 = vadd.f32 %v1278, %v1279
    %v1281 = vsel %vm72, %v1217, 0.0
    %v1282 = vrot.slane %v1281, 4
    %v1283 = vadd.f32 %v1281, %v1282
    %v1284 = vrot.slane %v1283, 2
    %v1285 = vadd.f32 %v1283, %v1284
    %v1286 = vrot.slane %v1285, 1
    %v1287 = vadd.f32 %v1285, %v1286
    %v1288 = vsel %vm72, %v1218, 0.0
    %v1289 = vrot.slane %v1288, 4
    %v1290 = vadd.f32 %v1288, %v1289
    %v1291 = vrot.slane %v1290, 2
    %v1292 = vadd.f32 %v1290, %v1291
    %v1293 = vrot.slane %v1292, 1
    %v1294 = vadd.f32 %v1292, %v1293
    %v1295 = vsel %vm72, %v1219, 0.0
    %v1296 = vrot.slane %v1295, 4
    %v1297 = vadd.f32 %v1295, %v1296
    %v1298 = vrot.slane %v1297, 2
    %v1299 = vadd.f32 %v1297, %v1298
    %v1300 = vrot.slane %v1299, 1
    %v1301 = vadd.f32 %v1299, %v1300
    %v1302 = vsel %vm72, %v1220, 0.0
    %v1303 = vrot.slane %v1302, 4
    %v1304 = vadd.f32 %v1302, %v1303
    %v1305 = vrot.slane %v1304, 2
    %v1306 = vadd.f32 %v1304, %v1305
    %v1307 = vrot.slane %v1306, 1
    %v1308 = vadd.f32 %v1306, %v1307
    %v1309 = vsel %vm72, %v1221, 0.0
    %v1310 = vrot.slane %v1309, 4
    %v1311 = vadd.f32 %v1309, %v1310
    %v1312 = vrot.slane %v1311, 2
    %v1313 = vadd.f32 %v1311, %v1312
    %v1314 = vrot.slane %v1313, 1
    %v1315 = vadd.f32 %v1313, %v1314
    %v1316 = vsel %vm72, %v1222, 0.0
    %v1317 = vrot.slane %v1316, 4
    %v1318 = vadd.f32 %v1316, %v1317
    %v1319 = vrot.slane %v1318, 2
    %v1320 = vadd.f32 %v1318, %v1319
    %v1321 = vrot.slane %v1320, 1
    %v1322 = vadd.f32 %v1320, %v1321
    %v1323 = vsel %vm72, %v1223, 0.0
    %v1324 = vrot.slane %v1323, 4
    %v1325 = vadd.f32 %v1323, %v1324
    %v1326 = vrot.slane %v1325, 2
    %v1327 = vadd.f32 %v1325, %v1326
    %v1328 = vrot.slane %v1327, 1
    %v1329 = vadd.f32 %v1327, %v1328
    %v1330 = vsel %vm72, %v1224, 0.0
    %v1331 = vrot.slane %v1330, 4
    %v1332 = vadd.f32 %v1330, %v1331
    %v1333 = vrot.slane %v1332, 2
    %v1334 = vadd.f32 %v1332, %v1333
    %v1335 = vrot.slane %v1334, 1
    %v1336 = vadd.f32 %v1334, %v1335
    %v1337 = vld [vmem:[#allocation2] sm:$0xff]
    %v1338 = vld [vmem:[#allocation2 + $0x8] sm:$0xff]
    %v1339 = vld [vmem:[#allocation2 + $0x10] sm:$0xff]
    %v1340 = vld [vmem:[#allocation2 + $0x18] sm:$0xff]
    %v1341 = vlaneseq
    %v1342 = vshrl.u32 %v1341, 7
    %v1343 = vsub.s32 0, %v1342
    %v1344 = vrot.slane %v56, %v1343
    %vm1361 = vcmask 1041409
    %v1362 = vsel %vm1361, %v1238, %v1231
    %vm1363 = vcmask 1042434
    %v1364 = vsel %vm1363, %v1245, %v1362
    %vm1365 = vcmask 1043459
    %v1366 = vsel %vm1365, %v1252, %v1364
    %vm1367 = vcmask 1044484
    %v1368 = vsel %vm1367, %v1259, %v1366
    %vm1369 = vcmask 1045509
    %v1370 = vsel %vm1369, %v1266, %v1368
    %vm1371 = vcmask 1046534
    %v1372 = vsel %vm1371, %v1273, %v1370
    %vm1373 = vcmask 1047559
    %v1374 = vsel %vm1373, %v1280, %v1372
    %v1375 = vsel %vm1361, %v1294, %v1287
    %v1376 = vsel %vm1363, %v1301, %v1375
    %v1377 = vsel %vm1365, %v1308, %v1376
    %v1378 = vsel %vm1367, %v1315, %v1377
    %v1379 = vsel %vm1369, %v1322, %v1378
    %v1380 = vsel %vm1371, %v1329, %v1379
    %v1381 = vsel %vm1373, %v1336, %v1380
    %v1382 = vsel %vm72, %v1374, 0
    %v1384 = vsel %vm72, %v1381, 0
    %1386 = vmatprep.subr.mxu0 0.0
    %1387 = vmatpush1.msra.mxu0 %v1337
    %1388 = vmatprep.subr.mxu0 0.0
    %1389 = vmatpush1.msra.mxu0 %v1338
    %1390 = vmatprep.subr.mxu0 0.0
    %1391 = vmatpush1.msra.mxu0 %v1339
    %1392 = vmatprep.subr.mxu0 0.0
    %1393 = vmatpush1.msra.mxu0 %v1340
    %1394 = vmatprep.subr.mxu0 0.0
    %1395 = vmatpush1.msra.mxu0 0.0
    %1396 = vmatprep.subr.mxu0 0.0
    %1397 = vmatpush1.msra.mxu0 0.0
    %1398 = vmatprep.subr.mxu0 0.0
    %1399 = vmatpush1.msra.mxu0 0.0
    %1400 = vmatprep.subr.mxu0 0.0
    %1401 = vmatpush1.msra.mxu0 0.0
    %1402 = vmatprep.subr.mxu0 0.0
    %1403 = vmatpush1.msra.mxu0 0.0
    %1404 = vmatprep.subr.mxu0 0.0
    %1405 = vmatpush1.msra.mxu0 0.0
    %1406 = vmatprep.subr.mxu0 0.0
    %1407 = vmatpush1.msra.mxu0 0.0
    %1408 = vmatprep.subr.mxu0 0.0
    %1409 = vmatpush1.msra.mxu0 0.0
    %1410 = vmatprep.subr.mxu0 0.0
    %1411 = vmatpush1.msra.mxu0 0.0
    %1412 = vmatprep.subr.mxu0 0.0
    %1413 = vmatpush1.msra.mxu0 0.0
    %1414 = vmatprep.subr.mxu0 0.0
    %1415 = vmatpush1.msra.mxu0 0.0
    %1416 = vmatprep.subr.mxu0 0.0
    %1417 = vmatpush1.msra.mxu0 0.0
    %1418 = vmatprep.subr.mxu0 0.0
    %1419 = vmatpush1.msra.mxu0 0.0
    %1420 = vmatprep.subr.mxu0 0.0
    %1421 = vmatpush1.msra.mxu0 0.0
    %1422 = vmatprep.subr.mxu0 0.0
    %1423 = vmatpush1.msra.mxu0 0.0
    %1424 = vmatprep.subr.mxu0 0.0
    %1425 = vmatpush1.msra.mxu0 0.0
    %1426 = vmatprep.subr.mxu0 0.0
    %1427 = vmatpush1.msra.mxu0 0.0
    %1428 = vmatprep.subr.mxu0 0.0
    %1429 = vmatpush1.msra.mxu0 0.0
    %1430 = vmatprep.subr.mxu0 0.0
    %1431 = vmatpush1.msra.mxu0 0.0
    %1432 = vmatprep.subr.mxu0 0.0
    %1433 = vmatpush1.msra.mxu0 0.0
    %1434 = vmatprep.subr.mxu0 0.0
    %1435 = vmatpush1.msra.mxu0 0.0
    %1436 = vmatprep.subr.mxu0 0.0
    %1437 = vmatpush1.msra.mxu0 0.0
    %1438 = vmatprep.subr.mxu0 0.0
    %1439 = vmatpush1.msra.mxu0 0.0
    %1440 = vmatprep.subr.mxu0 0.0
    %1441 = vmatpush1.msra.mxu0 0.0
    %1442 = vmatprep.subr.mxu0 0.0
    %1443 = vmatpush1.msra.mxu0 0.0
    %1444 = vmatprep.subr.mxu0 0.0
    %1445 = vmatpush1.msra.mxu0 0.0
    %1446 = vmatprep.subr.mxu0 0.0
    %1447 = vmatpush1.msra.mxu0 0.0
    %1448 = vmatprep.subr.mxu0 0.0
    %1449 = vmatpush1.msra.mxu0 0.0
    %1450 = vmatprep.mubr.f32.mxu0 0.0
    %1451 = vmatmul.mubr.f32.gmra.mrb[0].mxu0 %v1382
    %v1452 = vpop.f32.mrb[0].mxu0
    %v1453 = vadd.f32 %v1344, %v1452
    %v1454 = vpop.f32.mrb[0].mxu0
    %1455 = vmatprep.mubr.f32.mxu0 0.0
    %1456 = vmatmul.mubr.f32.gmra.mrb[0].mxu0 %v1384
    %v1457 = vpop.f32.mrb[0].mxu0
    %v1458 = vadd.f32 %v1344, %v1457
    %v1459 = vpop.f32.mrb[0].mxu0
    %1460 = vdwg.mxu0
    %v1461 = vadd.f32 %v50, %v1453
    %v1462 = vadd.f32 %v51, %v1458
    %v1463 = vsel %vm72, %v1461, 0.0
    %1464 = vadd.xlane.f32.xlu0 %v1463
    %v1465 = vpop.xlane.xlu0 %1464
    %v1466 = vsel %vm72, %v1462, 0.0
    %1467 = vadd.xlane.f32.xlu0 %v1466
    %v1468 = vpop.xlane.xlu0 %1467
    %v1469 = vrcp.pop 32.0
    %v1470 = vmul.f32 %v1465, %v1469
    %v1471 = vmul.f32 %v1468, %v1469
    %v1472 = vsub.f32 %v1461, %v1470
    %v1473 = vsub.f32 %v1462, %v1471
    %v1474 = vmul.f32 %v1472, %v1472
    %v1475 = vmul.f32 %v1473, %v1473
    %v1476 = vsel %vm72, %v1474, 0.0
    %1477 = vadd.xlane.f32.xlu0 %v1476
    %v1478 = vpop.xlane.xlu0 %1477
    %v1479 = vsel %vm72, %v1475, 0.0
    %1480 = vadd.xlane.f32.xlu0 %v1479
    %v1481 = vpop.xlane.xlu0 %1480
    %v1482 = vmul.f32 %v1478, %v1469
    %v1483 = vmul.f32 %v1481, %v1469
    %v1484 = vadd.f32 %v1482, 1e-05
    %v1485 = vadd.f32 %v1483, 1e-05
    %v1486 = vrsqrt.pop %v1484
    %v1487 = vrsqrt.pop %v1485
    %v1488 = vmul.f32 %v1472, %v1486
    %v1489 = vmul.f32 %v1473, %v1487
    %v1490 = vlaneseq
    %v1491 = vshrl.u32 %v1490, 7
    %v1492 = vsub.s32 0, %v1491
    %v1493 = vrot.slane %v57, %v1492
    %v1494 = vmul.f32 %v1488, %v1493
    %v1495 = vmul.f32 %v1489, %v1493
    %v1496 = vlaneseq
    %v1497 = vshrl.u32 %v1496, 7
    %v1498 = vsub.s32 0, %v1497
    %v1499 = vrot.slane %v58, %v1498
    %v1500 = vadd.f32 %v1494, %v1499
    %v1501 = vadd.f32 %v1495, %v1499
    %v1502 = vlaneseq
    %v1503 = vshrl.u32 %v1502, 7
    %v1504 = vsub.s32 0, %v1503
    %v1505 = vrot.slane %v55, %v1504
    %1510 = vrot.lane.b32.xlu0 %v1337, 96
    %v1511 = vpop.permute.xlu0 %1510
    %1512 = vrot.lane.b32.xlu0 %v1338, 96
    %v1513 = vpop.permute.xlu0 %1512
    %1514 = vrot.lane.b32.xlu0 %v1339, 96
    %v1515 = vpop.permute.xlu0 %1514
    %1516 = vrot.lane.b32.xlu0 %v1340, 96
    %v1517 = vpop.permute.xlu0 %1516
    %v1523 = vsel %vm72, %v1500, 0
    %v1526 = vsel %vm72, %v1501, 0
    %1528 = vmatprep.subr.mxu0 0.0
    %1529 = vmatpush1.msra.mxu0 %v1511
    %1530 = vmatprep.subr.mxu0 0.0
    %1531 = vmatpush1.msra.mxu0 %v1513
    %1532 = vmatprep.subr.mxu0 0.0
    %1533 = vmatpush1.msra.mxu0 %v1515
    %1534 = vmatprep.subr.mxu0 0.0
    %1535 = vmatpush1.msra.mxu0 %v1517
    %1536 = vmatprep.subr.mxu0 0.0
    %1537 = vmatpush1.msra.mxu0 0.0
    %1538 = vmatprep.subr.mxu0 0.0
    %1539 = vmatpush1.msra.mxu0 0.0
    %1540 = vmatprep.subr.mxu0 0.0
    %1541 = vmatpush1.msra.mxu0 0.0
    %1542 = vmatprep.subr.mxu0 0.0
    %1543 = vmatpush1.msra.mxu0 0.0
    %1544 = vmatprep.subr.mxu0 0.0
    %1545 = vmatpush1.msra.mxu0 0.0
    %1546 = vmatprep.subr.mxu0 0.0
    %1547 = vmatpush1.msra.mxu0 0.0
    %1548 = vmatprep.subr.mxu0 0.0
    %1549 = vmatpush1.msra.mxu0 0.0
    %1550 = vmatprep.subr.mxu0 0.0
    %1551 = vmatpush1.msra.mxu0 0.0
    %1552 = vmatprep.subr.mxu0 0.0
    %1553 = vmatpush1.msra.mxu0 0.0
    %1554 = vmatprep.subr.mxu0 0.0
    %1555 = vmatpush1.msra.mxu0 0.0
    %1556 = vmatprep.subr.mxu0 0.0
    %1557 = vmatpush1.msra.mxu0 0.0
    %1558 = vmatprep.subr.mxu0 0.0
    %1559 = vmatpush1.msra.mxu0 0.0
    %1560 = vmatprep.subr.mxu0 0.0
    %1561 = vmatpush1.msra.mxu0 0.0
    %1562 = vmatprep.subr.mxu0 0.0
    %1563 = vmatpush1.msra.mxu0 0.0
    %1564 = vmatprep.subr.mxu0 0.0
    %1565 = vmatpush1.msra.mxu0 0.0
    %1566 = vmatprep.subr.mxu0 0.0
    %1567 = vmatpush1.msra.mxu0 0.0
    %1568 = vmatprep.subr.mxu0 0.0
    %1569 = vmatpush1.msra.mxu0 0.0
    %1570 = vmatprep.subr.mxu0 0.0
    %1571 = vmatpush1.msra.mxu0 0.0
    %1572 = vmatprep.subr.mxu0 0.0
    %1573 = vmatpush1.msra.mxu0 0.0
    %1574 = vmatprep.subr.mxu0 0.0
    %1575 = vmatpush1.msra.mxu0 0.0
    %1576 = vmatprep.subr.mxu0 0.0
    %1577 = vmatpush1.msra.mxu0 0.0
    %1578 = vmatprep.subr.mxu0 0.0
    %1579 = vmatpush1.msra.mxu0 0.0
    %1580 = vmatprep.subr.mxu0 0.0
    %1581 = vmatpush1.msra.mxu0 0.0
    %1582 = vmatprep.subr.mxu0 0.0
    %1583 = vmatpush1.msra.mxu0 0.0
    %1584 = vmatprep.subr.mxu0 0.0
    %1585 = vmatpush1.msra.mxu0 0.0
    %1586 = vmatprep.subr.mxu0 0.0
    %1587 = vmatpush1.msra.mxu0 0.0
    %1588 = vmatprep.subr.mxu0 0.0
    %1589 = vmatpush1.msra.mxu0 0.0
    %1590 = vmatprep.subr.mxu0 0.0
    %1591 = vmatpush1.msra.mxu0 0.0
    %1592 = vmatprep.mubr.f32.mxu0 0.0
    %1593 = vmatmul.mubr.f32.gmra.mrb[0].mxu0 %v1523
    %v1594 = vpop.f32.mrb[0].mxu0
    %v1595 = vadd.f32 %v1505, %v1594
    %v1596 = vpop.f32.mrb[0].mxu0
    %1597 = vmatprep.mubr.f32.mxu0 0.0
    %1598 = vmatmul.mubr.f32.gmra.mrb[0].mxu0 %v1526
    %v1599 = vpop.f32.mrb[0].mxu0
    %v1600 = vadd.f32 %v1505, %v1599
    %v1601 = vpop.f32.mrb[0].mxu0
    %1602 = vdwg.mxu0
    %v1603 = vmax.f32 %v1595, 0.0
    %v1604 = vmax.f32 %v1600, 0.0
    %v1605 = vld [vmem:[%s5] sm:$0xff]
    %v1606 = vld [vmem:[%s5 + $0x8] sm:$0xff]
    %v1607 = vld [vmem:[%s5 + $0x10] sm:$0xff]
    %v1608 = vld [vmem:[%s5 + $0x18] sm:$0xff]
    %v1609 = vld [vmem:[%s5 + $0x20] sm:$0xff]
    %v1610 = vld [vmem:[%s5 + $0x28] sm:$0xff]
    %v1611 = vld [vmem:[%s5 + $0x30] sm:$0xff]
    %v1612 = vld [vmem:[%s5 + $0x38] sm:$0xff]
    %v1613 = vlaneseq
    %v1614 = vshrl.u32 %v1613, 7
    %v1615 = vsub.s32 0, %v1614
    %v1616 = vrot.slane %v59, %v1615
    %v1618 = vsel %vm166, %v1603, 0
    %v1621 = vsel %vm166, %v1604, 0
    %1623 = vmatprep.subr.mxu0 0.0
    %1624 = vmatpush1.msra.mxu0 %v1605
    %1625 = vmatprep.subr.mxu0 0.0
    %1626 = vmatpush1.msra.mxu0 %v1606
    %1627 = vmatprep.subr.mxu0 0.0
    %1628 = vmatpush1.msra.mxu0 %v1607
    %1629 = vmatprep.subr.mxu0 0.0
    %1630 = vmatpush1.msra.mxu0 %v1608
    %1631 = vmatprep.subr.mxu0 0.0
    %1632 = vmatpush1.msra.mxu0 %v1609
    %1633 = vmatprep.subr.mxu0 0.0
    %1634 = vmatpush1.msra.mxu0 %v1610
    %1635 = vmatprep.subr.mxu0 0.0
    %1636 = vmatpush1.msra.mxu0 %v1611
    %1637 = vmatprep.subr.mxu0 0.0
    %1638 = vmatpush1.msra.mxu0 %v1612
    %1639 = vmatprep.subr.mxu0 0.0
    %1640 = vmatpush1.msra.mxu0 0.0
    %1641 = vmatprep.subr.mxu0 0.0
    %1642 = vmatpush1.msra.mxu0 0.0
    %1643 = vmatprep.subr.mxu0 0.0
    %1644 = vmatpush1.msra.mxu0 0.0
    %1645 = vmatprep.subr.mxu0 0.0
    %1646 = vmatpush1.msra.mxu0 0.0
    %1647 = vmatprep.subr.mxu0 0.0
    %1648 = vmatpush1.msra.mxu0 0.0
    %1649 = vmatprep.subr.mxu0 0.0
    %1650 = vmatpush1.msra.mxu0 0.0
    %1651 = vmatprep.subr.mxu0 0.0
    %1652 = vmatpush1.msra.mxu0 0.0
    %1653 = vmatprep.subr.mxu0 0.0
    %1654 = vmatpush1.msra.mxu0 0.0
    %1655 = vmatprep.subr.mxu0 0.0
    %1656 = vmatpush1.msra.mxu0 0.0
    %1657 = vmatprep.subr.mxu0 0.0
    %1658 = vmatpush1.msra.mxu0 0.0
    %1659 = vmatprep.subr.mxu0 0.0
    %1660 = vmatpush1.msra.mxu0 0.0
    %1661 = vmatprep.subr.mxu0 0.0
    %1662 = vmatpush1.msra.mxu0 0.0
    %1663 = vmatprep.subr.mxu0 0.0
    %1664 = vmatpush1.msra.mxu0 0.0
    %1665 = vmatprep.subr.mxu0 0.0
    %1666 = vmatpush1.msra.mxu0 0.0
    %1667 = vmatprep.subr.mxu0 0.0
    %1668 = vmatpush1.msra.mxu0 0.0
    %1669 = vmatprep.subr.mxu0 0.0
    %1670 = vmatpush1.msra.mxu0 0.0
    %1671 = vmatprep.subr.mxu0 0.0
    %1672 = vmatpush1.msra.mxu0 0.0
    %1673 = vmatprep.subr.mxu0 0.0
    %1674 = vmatpush1.msra.mxu0 0.0
    %1675 = vmatprep.subr.mxu0 0.0
    %1676 = vmatpush1.msra.mxu0 0.0
    %1677 = vmatprep.subr.mxu0 0.0
    %1678 = vmatpush1.msra.mxu0 0.0
    %1679 = vmatprep.subr.mxu0 0.0
    %1680 = vmatpush1.msra.mxu0 0.0
    %1681 = vmatprep.subr.mxu0 0.0
    %1682 = vmatpush1.msra.mxu0 0.0
    %1683 = vmatprep.subr.mxu0 0.0
    %1684 = vmatpush1.msra.mxu0 0.0
    %1685 = vmatprep.subr.mxu0 0.0
    %1686 = vmatpush1.msra.mxu0 0.0
    %1687 = vmatprep.mubr.f32.mxu0 0.0
    %1688 = vmatmul.mubr.f32.gmra.mrb[0].mxu0 %v1618
    %v1689 = vpop.f32.mrb[0].mxu0
    %v1690 = vadd.f32 %v1616, %v1689
    %v1691 = vpop.f32.mrb[0].mxu0
    %1692 = vmatprep.mubr.f32.mxu0 0.0
    %1693 = vmatmul.mubr.f32.gmra.mrb[0].mxu0 %v1621
    %v1694 = vpop.f32.mrb[0].mxu0
    %v1695 = vadd.f32 %v1616, %v1694
    %v1696 = vpop.f32.mrb[0].mxu0
    %1697 = vdwg.mxu0
    %v1698 = vadd.f32 %v1500, %v1690
    %v1699 = vadd.f32 %v1501, %v1695
    %v1700 = vsel %vm72, %v1698, 0.0
    %1701 = vadd.xlane.f32.xlu0 %v1700
    %v1702 = vpop.xlane.xlu0 %1701
    %v1703 = vsel %vm72, %v1699, 0.0
    %1704 = vadd.xlane.f32.xlu0 %v1703
    %v1705 = vpop.xlane.xlu0 %1704
    %v1706 = vmul.f32 %v1702, %v1469
    %v1707 = vmul.f32 %v1705, %v1469
    %v1708 = vsub.f32 %v1698, %v1706
    %v1709 = vsub.f32 %v1699, %v1707
    %v1710 = vmul.f32 %v1708, %v1708
    %v1711 = vmul.f32 %v1709, %v1709
    %v1712 = vsel %vm72, %v1710, 0.0
    %1713 = vadd.xlane.f32.xlu0 %v1712
    %v1714 = vpop.xlane.xlu0 %1713
    %v1715 = vsel %vm72, %v1711, 0.0
    %1716 = vadd.xlane.f32.xlu0 %v1715
    %v1717 = vpop.xlane.xlu0 %1716
    %v1718 = vmul.f32 %v1714, %v1469
    %v1719 = vmul.f32 %v1717, %v1469
    %v1720 = vadd.f32 %v1718, 1e-05
    %v1721 = vadd.f32 %v1719, 1e-05
    %v1722 = vrsqrt.pop %v1720
    %v1723 = vrsqrt.pop %v1721
    %v1724 = vmul.f32 %v1708, %v1722
    %v1725 = vmul.f32 %v1709, %v1723
    %v1726 = vlaneseq
    %v1727 = vshrl.u32 %v1726, 7
    %v1728 = vsub.s32 0, %v1727
    %v1729 = vrot.slane %v60, %v1728
    %v1730 = vmul.f32 %v1724, %v1729
    %v1731 = vmul.f32 %v1725, %v1729
    %v1732 = vlaneseq
    %v1733 = vshrl.u32 %v1732, 7
    %v1734 = vsub.s32 0, %v1733
    %v1735 = vrot.slane %v61, %v1734
    %v1736 = vadd.f32 %v1730, %v1735
    %v1737 = vadd.f32 %v1731, %v1735
    %1738 = vst.msk [vmem:[#allocation5] sm:$0xff] %vm72, %v1736
    %1739 = vst.msk [vmem:[#allocation5 + $0x8] sm:$0xff] %vm72, %v1737
    // Predicated region
    $region46: #{tpu_custom_call.1} parent=1 // pred_check
      _
    $region47: #{tpu_custom_call.1} parent=1 // pred_check_branch
      %1741 = sbr.rel (0) target = $region49
    $region48: #{tpu_custom_call.1} parent=1 // pred_region
      %s1743 = ssub.s32 256, 256
      %1744 = vsyncadd [#allocation4], %s1743
      %s1745 = sshll.u32 [#allocation5], 4
      %s1746 = int_to_ptr.vmem [resolvable:$true] %s1745
      %1751 = dma.vmem_to_hbm [thread:$0]  %s1746, 256, %s10, [#allocation4], 128, 128, 8
    $region49: #{tpu_custom_call.1} parent=1 // pred_fallthru
      _
    // Predicated region
    $region50: #{tpu_custom_call.1} parent=1 // pred_check
      _
    $region51: #{tpu_custom_call.1} parent=1 // pred_check_branch
      %1753 = sbr.rel (0) target = $region53
    $region52: #{tpu_custom_call.1} parent=1 // pred_region
      %1754 = dma.done [#allocation4], 256
    $region53: #{tpu_custom_call.1} parent=1 // pred_fallthru
      _
    %1755 = vsyncpa [#allocation3], 1
    %1756 = vsyncpa [#allocation4], 1

</llo_original>
